<compile_context>
chip_gen: v6e
topology: v6e:2x2x1
jax: 0.10.0
libtpu: 0.0.40
codegen_flags: <defaults>
</compile_context>

<pallas_src>
import functools

import jax
import jax.numpy as jnp
from jax.experimental import pallas as pl
from jax.experimental.pallas import tpu as pltpu


# ----------------------------------------------------------------------------
# Small helpers
# ----------------------------------------------------------------------------
def _round_up(x, m):
    return (x + m - 1) // m * m


def _parity_split(x, pad_value=0.0):
    """(N, H, W, C) -> (N, 2, 2, ceil(H/2), ceil(W/2), C) even/odd row/col split.

    Done in plain JAX so that all in-kernel loads for stride-2 ops are
    unit-stride.  Padded entries (at most one row/col per parity plane) are
    never read by the kernels for the exact conv/pool geometry used here.
    """
    _, h, w, _ = x.shape
    he, we = -(-h // 2), -(-w // 2)
    rows = []
    for p in (0, 1):
        cols = []
        for q in (0, 1):
            t = x[:, p::2, q::2, :]
            t = jnp.pad(
                t,
                ((0, 0), (0, he - t.shape[1]), (0, we - t.shape[2]), (0, 0)),
                constant_values=pad_value,
            )
            cols.append(t)
        rows.append(jnp.stack(cols, axis=1))
    return jnp.stack(rows, axis=1)


# ----------------------------------------------------------------------------
# Pallas kernels
# ----------------------------------------------------------------------------
def _conv_s1_kernel(x_ref, w_ref, b_ref, o_ref, *, kh, kw, ho, wo):
    """Stride-1 conv + folded-BN bias + ReLU.

    x_ref: (1, Hp, Wp, Cin) bf16     w_ref: (kh, kw, Cin, Ct) bf16
    b_ref: (1, Ct) f32               o_ref: (1, ho, wo, Ct) f32  (wo % 8 == 0)
    """
    x = x_ref[...][0]                                  # (Hp, Wp, Cin)
    w = w_ref[...]                                     # (kh, kw, Cin, Ct)
    cin = x.shape[-1]
    ct = o_ref.shape[-1]
    acc = jnp.broadcast_to(b_ref[...], (ho * wo, ct)).astype(jnp.float32)
    for i in range(kh):
        for j in range(kw):
            patch = x[i:i + ho, j:j + wo, :].reshape(ho * wo, cin)
            acc = acc + jnp.dot(patch, w[i, j],
                                preferred_element_type=jnp.float32)
    o_ref[...] = jnp.maximum(acc, 0.0).reshape(1, ho, wo, ct).astype(o_ref.dtype)


def _conv_s2_kernel(xp_ref, w_ref, b_ref, o_ref, *, kh, kw, ho, wo):
    """Stride-2 conv + folded-BN bias + ReLU on a parity-split input.

    xp_ref: (1, 2, 2, He, We, Cin) bf16 -- [row-parity, col-parity] planes;
    every tap becomes a unit-stride slice of one plane.
    """
    xp = xp_ref[...][0]                                # (2, 2, He, We, Cin)
    w = w_ref[...]
    cin = xp.shape[-1]
    ct = o_ref.shape[-1]
    acc = jnp.broadcast_to(b_ref[...], (ho * wo, ct)).astype(jnp.float32)
    for i in range(kh):
        for j in range(kw):
            pi, oi = i % 2, i // 2
            pj, oj = j % 2, j // 2
            patch = xp[pi, pj, oi:oi + ho, oj:oj + wo, :].reshape(ho * wo, cin)
            acc = acc + jnp.dot(patch, w[i, j],
                                preferred_element_type=jnp.float32)
    o_ref[...] = jnp.maximum(acc, 0.0).reshape(1, ho, wo, ct).astype(o_ref.dtype)


def _maxpool_s2_kernel(xp_ref, o_ref, *, ksize, ho, wo):
    """3x3 / stride-2 max pool on a parity-split input (unit-stride loads)."""
    xp = xp_ref[...][0]                                # (2, 2, He, We, C)
    out = xp[0, 0, 0:ho, 0:wo, :]
    for idx in range(1, ksize * ksize):
        i, j = idx // ksize, idx % ksize
        out = jnp.maximum(
            out, xp[i % 2, j % 2, i // 2:i // 2 + ho, j // 2:j // 2 + wo, :])
    o_ref[...] = out.reshape(1, ho, wo, out.shape[-1]).astype(o_ref.dtype)


# ----------------------------------------------------------------------------
# Wrappers (padding, parity split, BlockSpecs, grid over batch x cout tiles)
# ----------------------------------------------------------------------------
def _cout_tile(cout):
    # Snap the Cout tile to the MXU width when the channel count allows it.
    for t in (256, 128):
        if cout > t and cout % t == 0:
            return t
    return cout


def conv_bn_relu(x_nhwc, w, b, *, stride, padding):
    """Conv2d (BN folded into w/b) + ReLU.  x_nhwc: (N, H, W, Cin) float."""
    assert stride in (1, 2)
    n, h0, w0, cin = x_nhwc.shape
    kh, kw, _, cout = w.shape
    hp, wp = h0 + 2 * padding, w0 + 2 * padding
    ho = (hp - kh) // stride + 1
    wo = (wp - kw) // stride + 1
    # Pad the output width to a multiple of 8: the (ho, wo, C) -> (ho*wo, C)
    # reshape then folds cleanly in the tiled layout.  Extra columns are
    # computed from zero padding and sliced off below.
    wo_pad = _round_up(wo, 8)
    wp_eff = (wo_pad - 1) * stride + kw

    x_p = jnp.pad(
        x_nhwc,
        ((0, 0), (padding, padding), (padding, wp_eff - w0 - padding), (0, 0)),
    ).astype(jnp.bfloat16)                             # bf16 feeds the MXU
    w_bf = w.astype(jnp.bfloat16)
    b2 = b.reshape(1, cout).astype(jnp.float32)

    ct = _cout_tile(cout)
    grid = (n, cout // ct)
    w_spec = pl.BlockSpec((kh, kw, cin, ct), lambda bi, co: (0, 0, 0, co))
    b_spec = pl.BlockSpec((1, ct), lambda bi, co: (0, co))
    o_spec = pl.BlockSpec((1, ho, wo_pad, ct), lambda bi, co: (bi, 0, 0, co))
    cparams = pltpu.CompilerParams(
        dimension_semantics=("parallel", "parallel"))

    if stride == 1:
        kernel = functools.partial(
            _conv_s1_kernel, kh=kh, kw=kw, ho=ho, wo=wo_pad)
        x_in = x_p
        x_spec = pl.BlockSpec((1, hp, wp_eff, cin),
                              lambda bi, co: (bi, 0, 0, 0))
    else:
        assert kh <= 3 and kw <= 3
        x_in = _parity_split(x_p)                      # (N, 2, 2, He, We, Cin)
        he, we = x_in.shape[3], x_in.shape[4]
        kernel = functools.partial(
            _conv_s2_kernel, kh=kh, kw=kw, ho=ho, wo=wo_pad)
        x_spec = pl.BlockSpec((1, 2, 2, he, we, cin),
                              lambda bi, co: (bi, 0, 0, 0, 0, 0))

    out = pl.pallas_call(
        kernel,
        out_shape=jax.ShapeDtypeStruct((n, ho, wo_pad, cout), jnp.float32),
        grid=grid,
        in_specs=[x_spec, w_spec, b_spec],
        out_specs=o_spec,
        compiler_params=cparams,
    )(x_in, w_bf, b2)
    return out[:, :, :wo, :]


def maxpool(x_nhwc, *, ksize, stride):
    assert ksize == 3 and stride == 2
    n, h, w, c = x_nhwc.shape
    ho = (h - ksize) // stride + 1
    wo = (w - ksize) // stride + 1
    xp = _parity_split(x_nhwc.astype(jnp.float32), pad_value=-jnp.inf)
    he, we = xp.shape[3], xp.shape[4]
    kernel = functools.partial(_maxpool_s2_kernel, ksize=ksize, ho=ho, wo=wo)
    return pl.pallas_call(
        kernel,
        out_shape=jax.ShapeDtypeStruct((n, ho, wo, c), jnp.float32),
        grid=(n,),
        in_specs=[pl.BlockSpec((1, 2, 2, he, we, c),
                               lambda bi: (bi, 0, 0, 0, 0, 0))],
        out_specs=pl.BlockSpec((1, ho, wo, c), lambda bi: (bi, 0, 0, 0)),
        compiler_params=pltpu.CompilerParams(
            dimension_semantics=("parallel",)),
    )(xp)


# ----------------------------------------------------------------------------
# Parameter construction (deterministic, synthetic) and BN folding
# ----------------------------------------------------------------------------
def _fold_bn(w, gamma, beta, mean, var, eps=1e-3):
    # conv has bias=False; fold eval-mode BN into weight/bias.
    scale = gamma / jnp.sqrt(var + eps)
    return w * scale[None, None, None, :], beta - mean * scale


def _make_conv_bn(key, kh, kw, cin, cout):
    k1, k2, k3, k4, k5 = jax.random.split(key, 5)
    w = 0.1 * jax.random.normal(k1, (kh, kw, cin, cout), jnp.float32)  # HWIO
    gamma = 1.0 + 0.1 * jax.random.normal(k2, (cout,), jnp.float32)
    beta = 0.1 * jax.random.normal(k3, (cout,), jnp.float32)
    mean = 0.1 * jax.random.normal(k4, (cout,), jnp.float32)
    var = jax.random.uniform(k5, (cout,), jnp.float32, 0.5, 1.5)
    return _fold_bn(w, gamma, beta, mean, var)


def make_reduction_a_params(key, in_channels, k, l, m, n):
    keys = jax.random.split(key, 4)
    return {
        "b0": _make_conv_bn(keys[0], 3, 3, in_channels, n),   # 3x3 s2
        "b1a": _make_conv_bn(keys[1], 1, 1, in_channels, k),  # 1x1 s1
        "b1b": _make_conv_bn(keys[2], 3, 3, k, l),            # 3x3 s1 p1
        "b1c": _make_conv_bn(keys[3], 3, 3, l, m),            # 3x3 s2
    }


def reduction_a(params, x_nchw):
    # NCHW -> NHWC (kept to preserve the PyTorch-facing layout).
    # TODO(synk): if the surrounding model consumes NHWC, drop both transposes
    # and write the three branches into channel-offset slices of one output
    # buffer instead of jnp.concatenate to save one HBM round-trip.
    x = jnp.transpose(x_nchw, (0, 2, 3, 1)).astype(jnp.float32)

    w, b = params["b0"]
    x0 = conv_bn_relu(x, w, b, stride=2, padding=0)

    w, b = params["b1a"]
    x1 = conv_bn_relu(x, w, b, stride=1, padding=0)
    w, b = params["b1b"]
    x1 = conv_bn_relu(x1, w, b, stride=1, padding=1)
    w, b = params["b1c"]
    x1 = conv_bn_relu(x1, w, b, stride=2, padding=0)

    x2 = maxpool(x, ksize=3, stride=2)

    out = jnp.concatenate([x0, x1, x2], axis=-1)   # channel concat (NHWC)
    return jnp.transpose(out, (0, 3, 1, 2))        # back to NCHW


# ----------------------------------------------------------------------------
# Pure-JAX f32 reference (sanity check of the module semantics)
# ----------------------------------------------------------------------------
def _ref_conv_bn_relu(x, w, b, *, stride, padding):
    y = jax.lax.conv_general_dilated(
        x, w, (stride, stride), [(padding, padding)] * 2,
        dimension_numbers=("NHWC", "HWIO", "NHWC"))
    return jnp.maximum(y + b, 0.0)


def _ref_reduction_a(params, x_nchw):
    x = jnp.transpose(x_nchw, (0, 2, 3, 1)).astype(jnp.float32)
    w, b = params["b0"]
    x0 = _ref_conv_bn_relu(x, w, b, stride=2, padding=0)
    w, b = params["b1a"]
    x1 = _ref_conv_bn_relu(x, w, b, stride=1, padding=0)
    w, b = params["b1b"]
    x1 = _ref_conv_bn_relu(x1, w, b, stride=1, padding=1)
    w, b = params["b1c"]
    x1 = _ref_conv_bn_relu(x1, w, b, stride=2, padding=0)
    x2 = jax.lax.reduce_window(
        x, -jnp.inf, jax.lax.max, (1, 3, 3, 1), (1, 2, 2, 1), "VALID")
    out = jnp.concatenate([x0, x1, x2], axis=-1)
    return jnp.transpose(out, (0, 3, 1, 2))


# ----------------------------------------------------------------------------
if __name__ == "__main__":
    # Small config: Reduction_A(in_channels=4, k=4, l=6, m=8, n=8)
    in_channels, k, l, m, n = 4, 4, 6, 8, 8
    key = jax.random.PRNGKey(0)
    kx, kp = jax.random.split(key)

    x = jax.random.normal(kx, (2, in_channels, 16, 16), jnp.float32)  # NCHW
    params = make_reduction_a_params(kp, in_channels, k, l, m, n)

    out = reduction_a(params, x)
    out = jax.block_until_ready(out)

    expected_shape = (2, n + m + in_channels, 7, 7)  # (2, 20, 7, 7)
    assert out.shape == expected_shape, (out.shape, expected_shape)

    ref = jax.block_until_ready(_ref_reduction_a(params, x))
    # Tolerance relaxed slightly vs a pure-f32 kernel: activations/weights are
    # cast to bf16 for the MXU (accumulation stays f32).
    assert jnp.allclose(out, ref, rtol=2e-2, atol=2e-2), float(
        jnp.max(jnp.abs(out - ref)))

    print("KERNEL_OK")
</pallas_src>

<mosaic_0001>
module attributes {stable_mosaic.version = 11 : i64} {
  func.func @_conv_s2_kernel(%arg0: i32, %arg1: i32, %arg2: memref<1x2x2x8x9x4xbf16, #tpu.memory_space<vmem>>, %arg3: memref<3x3x4x8xbf16, #tpu.memory_space<vmem>>, %arg4: memref<1x8xf32, #tpu.memory_space<vmem>>, %arg5: memref<1x7x8x8xf32, #tpu.memory_space<vmem>>) attributes {dimension_semantics = [#tpu.dimension_semantics<parallel>, #tpu.dimension_semantics<parallel>], iteration_bounds = array<i64: 2, 1>, scalar_prefetch = 0 : i64, scratch_operands = 0 : i64, tpu.core_type = #tpu.core_type<tc>, window_params = [{transform_indices = @transform_0, window_bounds = array<i64: 1, 2, 2, 8, 9, 4>}, {transform_indices = @transform_1, window_bounds = array<i64: 3, 3, 4, 8>}, {transform_indices = @transform_2, window_bounds = array<i64: 1, 8>}, {transform_indices = @transform_3, window_bounds = array<i64: 1, 7, 8, 8>}]} {
    %c0 = arith.constant 0 : index
    %c0_0 = arith.constant 0 : index
    %c0_1 = arith.constant 0 : index
    %c0_2 = arith.constant 0 : index
    %c0_3 = arith.constant 0 : index
    %c0_4 = arith.constant 0 : index
    %0 = vector.load %arg2[%c0, %c0_0, %c0_1, %c0_2, %c0_3, %c0_4] : memref<1x2x2x8x9x4xbf16, #tpu.memory_space<vmem>>, vector<1x2x2x8x9x4xbf16>
    %1 = vector.shape_cast %0 : vector<1x2x2x8x9x4xbf16> to vector<2x2x8x9x4xbf16>
    %c0_5 = arith.constant 0 : index
    %c0_6 = arith.constant 0 : index
    %c0_7 = arith.constant 0 : index
    %c0_8 = arith.constant 0 : index
    %2 = vector.load %arg3[%c0_5, %c0_6, %c0_7, %c0_8] : memref<3x3x4x8xbf16, #tpu.memory_space<vmem>>, vector<3x3x4x8xbf16>
    %c0_9 = arith.constant 0 : index
    %c0_10 = arith.constant 0 : index
    %3 = vector.load %arg4[%c0_9, %c0_10] : memref<1x8xf32, #tpu.memory_space<vmem>>, vector<1x8xf32>
    %4 = vector.shape_cast %3 : vector<1x8xf32> to vector<1x8xf32>
    %5 = vector.broadcast %4 : vector<1x8xf32> to vector<56x8xf32>
    %6 = vector.extract_strided_slice %1 {offsets = [0, 0, 0, 0, 0], sizes = [1, 1, 7, 8, 4], strides = [1, 1, 1, 1, 1]} : vector<2x2x8x9x4xbf16> to vector<1x1x7x8x4xbf16>
    %7 = vector.shape_cast %6 : vector<1x1x7x8x4xbf16> to vector<7x8x4xbf16>
    %8 = vector.shape_cast %7 : vector<7x8x4xbf16> to vector<56x4xbf16>
    %9 = vector.extract_strided_slice %2 {offsets = [0, 0, 0, 0], sizes = [1, 1, 4, 8], strides = [1, 1, 1, 1]} : vector<3x3x4x8xbf16> to vector<1x1x4x8xbf16>
    %10 = vector.shape_cast %9 : vector<1x1x4x8xbf16> to vector<4x8xbf16>
    %cst = arith.constant dense<0.000000e+00> : vector<56x8xf32>
    %11 = tpu.matmul %8, %10, %cst {dimension_numbers = #tpu.dot_dimension_numbers<[1], [0], [0], [1], [0, 0, 1, 1], [], []>} : vector<56x4xbf16>, vector<4x8xbf16>, vector<56x8xf32> -> vector<56x8xf32>
    %12 = arith.addf %5, %11 : vector<56x8xf32>
    %13 = vector.extract_strided_slice %1 {offsets = [0, 1, 0, 0, 0], sizes = [1, 1, 7, 8, 4], strides = [1, 1, 1, 1, 1]} : vector<2x2x8x9x4xbf16> to vector<1x1x7x8x4xbf16>
    %14 = vector.shape_cast %13 : vector<1x1x7x8x4xbf16> to vector<7x8x4xbf16>
    %15 = vector.shape_cast %14 : vector<7x8x4xbf16> to vector<56x4xbf16>
    %16 = vector.extract_strided_slice %2 {offsets = [0, 1, 0, 0], sizes = [1, 1, 4, 8], strides = [1, 1, 1, 1]} : vector<3x3x4x8xbf16> to vector<1x1x4x8xbf16>
    %17 = vector.shape_cast %16 : vector<1x1x4x8xbf16> to vector<4x8xbf16>
    %cst_11 = arith.constant dense<0.000000e+00> : vector<56x8xf32>
    %18 = tpu.matmul %15, %17, %cst_11 {dimension_numbers = #tpu.dot_dimension_numbers<[1], [0], [0], [1], [0, 0, 1, 1], [], []>} : vector<56x4xbf16>, vector<4x8xbf16>, vector<56x8xf32> -> vector<56x8xf32>
    %19 = arith.addf %12, %18 : vector<56x8xf32>
    %20 = vector.extract_strided_slice %1 {offsets = [0, 0, 0, 1, 0], sizes = [1, 1, 7, 8, 4], strides = [1, 1, 1, 1, 1]} : vector<2x2x8x9x4xbf16> to vector<1x1x7x8x4xbf16>
    %21 = vector.shape_cast %20 : vector<1x1x7x8x4xbf16> to vector<7x8x4xbf16>
    %22 = vector.shape_cast %21 : vector<7x8x4xbf16> to vector<56x4xbf16>
    %23 = vector.extract_strided_slice %2 {offsets = [0, 2, 0, 0], sizes = [1, 1, 4, 8], strides = [1, 1, 1, 1]} : vector<3x3x4x8xbf16> to vector<1x1x4x8xbf16>
    %24 = vector.shape_cast %23 : vector<1x1x4x8xbf16> to vector<4x8xbf16>
    %cst_12 = arith.constant dense<0.000000e+00> : vector<56x8xf32>
    %25 = tpu.matmul %22, %24, %cst_12 {dimension_numbers = #tpu.dot_dimension_numbers<[1], [0], [0], [1], [0, 0, 1, 1], [], []>} : vector<56x4xbf16>, vector<4x8xbf16>, vector<56x8xf32> -> vector<56x8xf32>
    %26 = arith.addf %19, %25 : vector<56x8xf32>
    %27 = vector.extract_strided_slice %1 {offsets = [1, 0, 0, 0, 0], sizes = [1, 1, 7, 8, 4], strides = [1, 1, 1, 1, 1]} : vector<2x2x8x9x4xbf16> to vector<1x1x7x8x4xbf16>
    %28 = vector.shape_cast %27 : vector<1x1x7x8x4xbf16> to vector<7x8x4xbf16>
    %29 = vector.shape_cast %28 : vector<7x8x4xbf16> to vector<56x4xbf16>
    %30 = vector.extract_strided_slice %2 {offsets = [1, 0, 0, 0], sizes = [1, 1, 4, 8], strides = [1, 1, 1, 1]} : vector<3x3x4x8xbf16> to vector<1x1x4x8xbf16>
    %31 = vector.shape_cast %30 : vector<1x1x4x8xbf16> to vector<4x8xbf16>
    %cst_13 = arith.constant dense<0.000000e+00> : vector<56x8xf32>
    %32 = tpu.matmul %29, %31, %cst_13 {dimension_numbers = #tpu.dot_dimension_numbers<[1], [0], [0], [1], [0, 0, 1, 1], [], []>} : vector<56x4xbf16>, vector<4x8xbf16>, vector<56x8xf32> -> vector<56x8xf32>
    %33 = arith.addf %26, %32 : vector<56x8xf32>
    %34 = vector.extract_strided_slice %1 {offsets = [1, 1, 0, 0, 0], sizes = [1, 1, 7, 8, 4], strides = [1, 1, 1, 1, 1]} : vector<2x2x8x9x4xbf16> to vector<1x1x7x8x4xbf16>
    %35 = vector.shape_cast %34 : vector<1x1x7x8x4xbf16> to vector<7x8x4xbf16>
    %36 = vector.shape_cast %35 : vector<7x8x4xbf16> to vector<56x4xbf16>
    %37 = vector.extract_strided_slice %2 {offsets = [1, 1, 0, 0], sizes = [1, 1, 4, 8], strides = [1, 1, 1, 1]} : vector<3x3x4x8xbf16> to vector<1x1x4x8xbf16>
    %38 = vector.shape_cast %37 : vector<1x1x4x8xbf16> to vector<4x8xbf16>
    %cst_14 = arith.constant dense<0.000000e+00> : vector<56x8xf32>
    %39 = tpu.matmul %36, %38, %cst_14 {dimension_numbers = #tpu.dot_dimension_numbers<[1], [0], [0], [1], [0, 0, 1, 1], [], []>} : vector<56x4xbf16>, vector<4x8xbf16>, vector<56x8xf32> -> vector<56x8xf32>
    %40 = arith.addf %33, %39 : vector<56x8xf32>
    %41 = vector.extract_strided_slice %1 {offsets = [1, 0, 0, 1, 0], sizes = [1, 1, 7, 8, 4], strides = [1, 1, 1, 1, 1]} : vector<2x2x8x9x4xbf16> to vector<1x1x7x8x4xbf16>
    %42 = vector.shape_cast %41 : vector<1x1x7x8x4xbf16> to vector<7x8x4xbf16>
    %43 = vector.shape_cast %42 : vector<7x8x4xbf16> to vector<56x4xbf16>
    %44 = vector.extract_strided_slice %2 {offsets = [1, 2, 0, 0], sizes = [1, 1, 4, 8], strides = [1, 1, 1, 1]} : vector<3x3x4x8xbf16> to vector<1x1x4x8xbf16>
    %45 = vector.shape_cast %44 : vector<1x1x4x8xbf16> to vector<4x8xbf16>
    %cst_15 = arith.constant dense<0.000000e+00> : vector<56x8xf32>
    %46 = tpu.matmul %43, %45, %cst_15 {dimension_numbers = #tpu.dot_dimension_numbers<[1], [0], [0], [1], [0, 0, 1, 1], [], []>} : vector<56x4xbf16>, vector<4x8xbf16>, vector<56x8xf32> -> vector<56x8xf32>
    %47 = arith.addf %40, %46 : vector<56x8xf32>
    %48 = vector.extract_strided_slice %1 {offsets = [0, 0, 1, 0, 0], sizes = [1, 1, 7, 8, 4], strides = [1, 1, 1, 1, 1]} : vector<2x2x8x9x4xbf16> to vector<1x1x7x8x4xbf16>
    %49 = vector.shape_cast %48 : vector<1x1x7x8x4xbf16> to vector<7x8x4xbf16>
    %50 = vector.shape_cast %49 : vector<7x8x4xbf16> to vector<56x4xbf16>
    %51 = vector.extract_strided_slice %2 {offsets = [2, 0, 0, 0], sizes = [1, 1, 4, 8], strides = [1, 1, 1, 1]} : vector<3x3x4x8xbf16> to vector<1x1x4x8xbf16>
    %52 = vector.shape_cast %51 : vector<1x1x4x8xbf16> to vector<4x8xbf16>
    %cst_16 = arith.constant dense<0.000000e+00> : vector<56x8xf32>
    %53 = tpu.matmul %50, %52, %cst_16 {dimension_numbers = #tpu.dot_dimension_numbers<[1], [0], [0], [1], [0, 0, 1, 1], [], []>} : vector<56x4xbf16>, vector<4x8xbf16>, vector<56x8xf32> -> vector<56x8xf32>
    %54 = arith.addf %47, %53 : vector<56x8xf32>
    %55 = vector.extract_strided_slice %1 {offsets = [0, 1, 1, 0, 0], sizes = [1, 1, 7, 8, 4], strides = [1, 1, 1, 1, 1]} : vector<2x2x8x9x4xbf16> to vector<1x1x7x8x4xbf16>
    %56 = vector.shape_cast %55 : vector<1x1x7x8x4xbf16> to vector<7x8x4xbf16>
    %57 = vector.shape_cast %56 : vector<7x8x4xbf16> to vector<56x4xbf16>
    %58 = vector.extract_strided_slice %2 {offsets = [2, 1, 0, 0], sizes = [1, 1, 4, 8], strides = [1, 1, 1, 1]} : vector<3x3x4x8xbf16> to vector<1x1x4x8xbf16>
    %59 = vector.shape_cast %58 : vector<1x1x4x8xbf16> to vector<4x8xbf16>
    %cst_17 = arith.constant dense<0.000000e+00> : vector<56x8xf32>
    %60 = tpu.matmul %57, %59, %cst_17 {dimension_numbers = #tpu.dot_dimension_numbers<[1], [0], [0], [1], [0, 0, 1, 1], [], []>} : vector<56x4xbf16>, vector<4x8xbf16>, vector<56x8xf32> -> vector<56x8xf32>
    %61 = arith.addf %54, %60 : vector<56x8xf32>
    %62 = vector.extract_strided_slice %1 {offsets = [0, 0, 1, 1, 0], sizes = [1, 1, 7, 8, 4], strides = [1, 1, 1, 1, 1]} : vector<2x2x8x9x4xbf16> to vector<1x1x7x8x4xbf16>
    %63 = vector.shape_cast %62 : vector<1x1x7x8x4xbf16> to vector<7x8x4xbf16>
    %64 = vector.shape_cast %63 : vector<7x8x4xbf16> to vector<56x4xbf16>
    %65 = vector.extract_strided_slice %2 {offsets = [2, 2, 0, 0], sizes = [1, 1, 4, 8], strides = [1, 1, 1, 1]} : vector<3x3x4x8xbf16> to vector<1x1x4x8xbf16>
    %66 = vector.shape_cast %65 : vector<1x1x4x8xbf16> to vector<4x8xbf16>
    %cst_18 = arith.constant dense<0.000000e+00> : vector<56x8xf32>
    %67 = tpu.matmul %64, %66, %cst_18 {dimension_numbers = #tpu.dot_dimension_numbers<[1], [0], [0], [1], [0, 0, 1, 1], [], []>} : vector<56x4xbf16>, vector<4x8xbf16>, vector<56x8xf32> -> vector<56x8xf32>
    %68 = arith.addf %61, %67 : vector<56x8xf32>
    %cst_19 = arith.constant 0.000000e+00 : f32
    %69 = vector.broadcast %cst_19 : f32 to vector<56x8xf32>
    %70 = arith.maximumf %68, %69 : vector<56x8xf32>
    %71 = vector.shape_cast %70 : vector<56x8xf32> to vector<1x7x8x8xf32>
    %c0_20 = arith.constant 0 : index
    %c0_21 = arith.constant 0 : index
    %c0_22 = arith.constant 0 : index
    %c0_23 = arith.constant 0 : index
    %72 = vector.load %arg5[%c0_20, %c0_21, %c0_22, %c0_23] : memref<1x7x8x8xf32, #tpu.memory_space<vmem>>, vector<1x7x8x8xf32>
    tpu.vector_store %arg5[%c0_20, %c0_21, %c0_22, %c0_23], %71 {strides = array<i32>} : memref<1x7x8x8xf32, #tpu.memory_space<vmem>>, vector<1x7x8x8xf32>,
    return
  }
  func.func @transform_0(%arg0: i32, %arg1: i32) -> (i32, i32, i32, i32, i32, i32) {
    %c0_i32 = arith.constant 0 : i32
    %c0_i32_0 = arith.constant 0 : i32
    %c0_i32_1 = arith.constant 0 : i32
    %c0_i32_2 = arith.constant 0 : i32
    %c0_i32_3 = arith.constant 0 : i32
    %c0_i32_4 = arith.constant 0 : i32
    return %arg0, %c0_i32, %c0_i32_0, %c0_i32_1, %c0_i32_2, %c0_i32_3 : i32, i32, i32, i32, i32, i32
  }
  func.func @transform_1(%arg0: i32, %arg1: i32) -> (i32, i32, i32, i32) {
    %c0_i32 = arith.constant 0 : i32
    %c0_i32_0 = arith.constant 0 : i32
    %c0_i32_1 = arith.constant 0 : i32
    %c0_i32_2 = arith.constant 0 : i32
    return %c0_i32, %c0_i32_0, %c0_i32_1, %arg1 : i32, i32, i32, i32
  }
  func.func @transform_2(%arg0: i32, %arg1: i32) -> (i32, i32) {
    %c0_i32 = arith.constant 0 : i32
    %c0_i32_0 = arith.constant 0 : i32
    return %c0_i32, %arg1 : i32, i32
  }
  func.func @transform_3(%arg0: i32, %arg1: i32) -> (i32, i32, i32, i32) {
    %c0_i32 = arith.constant 0 : i32
    %c0_i32_0 = arith.constant 0 : i32
    %c0_i32_1 = arith.constant 0 : i32
    return %arg0, %c0_i32, %c0_i32_0, %arg1 : i32, i32, i32, i32
  }
}

</mosaic_0001>

<llo_original>
// kernel: tpu_custom_call.1
$region0: #{tpu_custom_call.1}
  #allocation0 [shape = 'u32[]', space=smem, size = 0x4, offset = 0x4, fixed_abs, tag = 'smem constant byte address 0x4 - core index']
  #allocation1 [shape = 'u32[144,128]{1,0:T(1,128)}', space=vmem, size = 0x12000, scoped, tag = 'internal scratch']
  %s0 = inlined_call_operand.vmem [shape: bf16[2,2,2,8,9,4], index: 0, kind: input, shape index: {}]
  %s1 = inlined_call_operand.vmem [shape: bf16[3,3,4,8], index: 1, kind: input, shape index: {}]
  %s2 = inlined_call_operand.vmem [shape: f32[1,8], index: 2, kind: input, shape index: {}]
  %s3 = inlined_call_operand.hbm [shape: f32[2,7,8,8], index: 3, kind: output, shape index: {}]
  %s4 = sld [smem:[#allocation0]]
  $region45: #{tpu_custom_call.1} parent=0
    _
  %s6 = ssub.s32 1, %s4
  %s7 = scalar_select 0, %s6, %s4
  $region1: #{tpu_custom_call.1} parent=0
    #allocation2 [shape = 'u8[57344]{0}', space=vmem, size = 0xe000, scoped, tag = 'output window, operand 0']
    #allocation3 [shape = 's32[2]{0}', space=sflag, size = 0x8, scoped, tag = 'scoped memory for tpu_custom_call.1']
    %8 = vsyncpa [#allocation3], 0
    %s9 = scalar_lea.sflag [#allocation3], 1
    %10 = vsyncpa %s9, 0
    loop: start=0, step=1, limit=4
    $region2: #{tpu_custom_call.1} parent=1 // loop_pre_header
      _
    $region3: #{tpu_custom_call.1} parent=1 // loop_header
      %s12 = sphi 0, %s16
      %p13 = scmp.ge.s32.totalorder %s12, 4
      %s19 = sphi 0, %s31
      %s20 = sphi 0, %s27
      %s21 = sphi 0, %s19
      %s22 = sphi 0, %s20
      %s23 = sphi 0, %s21
      %s24 = sphi 0, %s22
      %s34 = sphi 0, %s36
      %s37 = sphi 0, %s34
      %s38 = sphi 0, %s37
      %s54 = sphi 0, %s38
      %s60 = sphi 0, %s62
      %s63 = sphi 0, %s60
      %s64 = sphi 0, %s63
      %s80 = sphi 0, %s64
      %s86 = sphi 0, %s88
      %s89 = sphi 0, %s86
      %s90 = sphi 0, %s89
      %s106 = sphi 0, %s90
      %s114 = sphi 0, %s116
      %s117 = sphi 0, %s114
      %s118 = sphi 0, %s117
      %s134 = sphi 0, %s118
    $region4: #{tpu_custom_call.1} parent=1 // loop_header_branch
      %15 = sbr.rel (%p13) target = $region8
    $region5: #{tpu_custom_call.1} parent=1 // loop_body
      %s17 = ssub.s32 %s12, 1
      %s18 = ssub.s32 %s12, 2
      %s25 = sadd.s32 1, %s20
      %p26 = scmp.ge.s32.totalorder %s25, 1
      %s27 = scalar_select %p26, 0, %s25
      %s28 = sadd.s32 1, %s19
      %s29 = scalar_select %p26, %s28, %s19
      %p30 = scmp.ge.s32.totalorder %s29, 2
      %s31 = scalar_select %p30, 0, %s29
      %s32 = ssub.s32 %s19, %s31
      %p33 = scmp.eq.s32.totalorder %s32, 0
      %s35 = sadd.s32 %s34, 1
      %s36 = scalar_select %p33, %s34, %s35
      %p39 = pneg %p33
      %p40 = scmp.eq.s32.totalorder %s12, 1
      %p41 = por %p39, %p40
      %p42 = scmp.ne.s32.totalorder %s34, %s37
      %p43 = scmp.eq.s32.totalorder %s12, 0
      %p44 = por %p42, %p43
      %p45 = scmp.ne.s32.totalorder %s34, %s37
      %p46 = scmp.eq.s32.totalorder %s17, 1
      %p47 = por %p45, %p46
      %p48 = scmp.ne.s32.totalorder %s37, %s38
      %p49 = scmp.eq.s32.totalorder %s17, 0
      %p50 = por %p48, %p49
      %p51 = scmp.ne.s32.totalorder %s37, %s38
      %p52 = scmp.eq.s32.totalorder %s18, 1
      %p53 = por %p51, %p52
      %p55 = scmp.ne.s32.totalorder %s38, %s54
      %p56 = scmp.eq.s32.totalorder %s18, 0
      %p57 = por %p55, %p56
      %s58 = ssub.s32 %s20, %s27
      %p59 = scmp.eq.s32.totalorder %s58, 0
      %s61 = sadd.s32 %s60, 1
      %s62 = scalar_select %p59, %s60, %s61
      %p65 = pneg %p59
      %p66 = scmp.eq.s32.totalorder %s12, 1
      %p67 = por %p65, %p66
      %p68 = scmp.ne.s32.totalorder %s60, %s63
      %p69 = scmp.eq.s32.totalorder %s12, 0
      %p70 = por %p68, %p69
      %p71 = scmp.ne.s32.totalorder %s60, %s63
      %p72 = scmp.eq.s32.totalorder %s17, 1
      %p73 = por %p71, %p72
      %p74 = scmp.ne.s32.totalorder %s63, %s64
      %p75 = scmp.eq.s32.totalorder %s17, 0
      %p76 = por %p74, %p75
      %p77 = scmp.ne.s32.totalorder %s63, %s64
      %p78 = scmp.eq.s32.totalorder %s18, 1
      %p79 = por %p77, %p78
      %p81 = scmp.ne.s32.totalorder %s64, %s80
      %p82 = scmp.eq.s32.totalorder %s18, 0
      %p83 = por %p81, %p82
      %s84 = ssub.s32 %s20, %s27
      %p85 = scmp.eq.s32.totalorder %s84, 0
      %s87 = sadd.s32 %s86, 1
      %s88 = scalar_select %p85, %s86, %s87
      %p91 = pneg %p85
      %p92 = scmp.eq.s32.totalorder %s12, 1
      %p93 = por %p91, %p92
      %p94 = scmp.ne.s32.totalorder %s86, %s89
      %p95 = scmp.eq.s32.totalorder %s12, 0
      %p96 = por %p94, %p95
      %p97 = scmp.ne.s32.totalorder %s86, %s89
      %p98 = scmp.eq.s32.totalorder %s17, 1
      %p99 = por %p97, %p98
      %p100 = scmp.ne.s32.totalorder %s89, %s90
      %p101 = scmp.eq.s32.totalorder %s17, 0
      %p102 = por %p100, %p101
      %p103 = scmp.ne.s32.totalorder %s89, %s90
      %p104 = scmp.eq.s32.totalorder %s18, 1
      %p105 = por %p103, %p104
      %p107 = scmp.ne.s32.totalorder %s90, %s106
      %p108 = scmp.eq.s32.totalorder %s18, 0
      %p109 = por %p107, %p108
      %s110 = ssub.s32 %s19, %s31
      %s111 = ssub.s32 %s20, %s27
      %s112 = sor.u32 %s110, %s111
      %p113 = scmp.eq.s32.totalorder %s112, 0
      %s115 = sadd.s32 %s114, 1
      %s116 = scalar_select %p113, %s114, %s115
      %p119 = pneg %p113
      %p120 = scmp.eq.s32.totalorder %s12, 1
      %p121 = por %p119, %p120
      %p122 = scmp.ne.s32.totalorder %s114, %s117
      %p123 = scmp.eq.s32.totalorder %s12, 0
      %p124 = por %p122, %p123
      %p125 = scmp.ne.s32.totalorder %s114, %s117
      %p126 = scmp.eq.s32.totalorder %s17, 1
      %p127 = por %p125, %p126
      %p128 = scmp.ne.s32.totalorder %s117, %s118
      %p129 = scmp.eq.s32.totalorder %s17, 0
      %p130 = por %p128, %p129
      %p131 = scmp.ne.s32.totalorder %s117, %s118
      %p132 = scmp.eq.s32.totalorder %s18, 1
      %p133 = por %p131, %p132
      %p135 = scmp.ne.s32.totalorder %s118, %s134
      %p136 = scmp.eq.s32.totalorder %s18, 0
      %p137 = por %p135, %p136
      %p138 = scmp.le.s32.totalorder 1, %s12
      %p139 = scmp.lt.s32.totalorder %s12, 3
      %p140 = pnand %p138, %p139
      %p141 = pneg %p140
      // Predicated region
      $region9: #{tpu_custom_call.1} parent=5 // pred_check
        _
      $region10: #{tpu_custom_call.1} parent=5 // pred_check_branch
        %143 = sbr.rel (%p140) target = $region12
      $region11: #{tpu_custom_call.1} parent=5 // pred_region
        %s144 = ssub.s32 %s12, 1
        // Predicated region
        $region13: #{tpu_custom_call.1} parent=11 // pred_check
          %p145 = pneg %p76
        $region14: #{tpu_custom_call.1} parent=11 // pred_check_branch
          %147 = sbr.rel (%p145) target = $region16
        $region15: #{tpu_custom_call.1} parent=11 // pred_region
          %p148 = scmp.lt.s32.totalorder %s22, 0
          %s149 = scalar_select %p148, %s22, 0
          %s150 = smul.addr %s149, 2
          %s151 = scalar_lea.vmem %s1, %s150
        $region16: #{tpu_custom_call.1} parent=11 // pred_fallthru
          _
        // Predicated region
        $region17: #{tpu_custom_call.1} parent=11 // pred_check
          %p152 = pneg %p102
        $region18: #{tpu_custom_call.1} parent=11 // pred_check_branch
          %154 = sbr.rel (%p152) target = $region20
        $region19: #{tpu_custom_call.1} parent=11 // pred_region
          %p155 = scmp.lt.s32.totalorder %s22, 0
          %s156 = scalar_select %p155, %s22, 0
          %s157 = scalar_lea.vmem %s2, %s156
        $region20: #{tpu_custom_call.1} parent=11 // pred_fallthru
          _
      $region12: #{tpu_custom_call.1} parent=5 // pred_fallthru
        _
      %p158 = scmp.lt.s32.totalorder %s12, 2
      // Predicated region
      $region21: #{tpu_custom_call.1} parent=5 // pred_check
        %p159 = pneg %p158
      $region22: #{tpu_custom_call.1} parent=5 // pred_check_branch
        %161 = sbr.rel (%p159) target = $region24
      $region23: #{tpu_custom_call.1} parent=5 // pred_region
        // Predicated region
        $region25: #{tpu_custom_call.1} parent=23 // pred_check
          %p162 = pneg %p44
        $region26: #{tpu_custom_call.1} parent=23 // pred_check_branch
          %164 = sbr.rel (%p162) target = $region28
        $region27: #{tpu_custom_call.1} parent=23 // pred_region
          %p165 = scmp.lt.s32.totalorder %s19, 1
          %s166 = scalar_select %p165, %s19, 1
          %s167 = smul.addr %s166, 64
          %s168 = smul.addr %s167, 4
          %s169 = scalar_lea.vmem %s0, %s168
        $region28: #{tpu_custom_call.1} parent=23 // pred_fallthru
          _
      $region24: #{tpu_custom_call.1} parent=5 // pred_fallthru
        _
      %p170 = scmp.le.s32.totalorder 1, %s12
      %p171 = scmp.lt.s32.totalorder %s12, 3
      %p172 = pnand %p170, %p171
      %p173 = pneg %p172
      // Predicated region
      $region29: #{tpu_custom_call.1} parent=5 // pred_check
        _
      $region30: #{tpu_custom_call.1} parent=5 // pred_check_branch
        %175 = sbr.rel (%p172) target = $region32
      $region31: #{tpu_custom_call.1} parent=5 // pred_region
        %s176 = ssub.s32 %s12, 1
        %p177 = scmp.lt.s32.totalorder %s21, 1
        %s178 = scalar_select %p177, %s21, 1
        %s179 = smul.addr %s178, 64
        %s180 = smul.addr %s179, 4
        %s181 = scalar_lea.vmem %s0, %s180
        %p182 = pneg %p50
        %p183 = pneg %p47
        %p184 = scmp.lt.s32.totalorder %s22, 0
        %s185 = scalar_select %p184, %s22, 0
        %s186 = smul.addr %s185, 2
        %s187 = scalar_lea.vmem %s1, %s186
        %p188 = pneg %p76
        %p189 = pneg %p73
        %p190 = scmp.lt.s32.totalorder %s22, 0
        %s191 = scalar_select %p190, %s22, 0
        %s192 = scalar_lea.vmem %s2, %s191
        %p193 = pneg %p102
        %p194 = pneg %p99
        %p195 = pneg %p130
        %p196 = pneg %p127
        %s197 = sand.u32 %s117, 1
        %s198 = scalar_lea.sflag [#allocation3], %s197
        %s199 = sand.u32 %s117, 1
        %s200 = smul.addr %s199, 56
        %s201 = scalar_lea.vmem [#allocation2], %s200
        %p202 = scmp.lt.s32.totalorder %s21, 1
        %s203 = scalar_select %p202, %s21, 1
        %s204 = smul.addr %s203, 64
        %s205 = smul.addr %s204, 4
        %s206 = scalar_lea.vmem %s0, %s205
        %p207 = scmp.lt.s32.totalorder %s22, 0
        %s208 = scalar_select %p207, %s22, 0
        %s209 = smul.addr %s208, 2
        %s210 = scalar_lea.vmem %s1, %s209
        %p211 = scmp.lt.s32.totalorder %s22, 0
        %s212 = scalar_select %p211, %s22, 0
        %s213 = scalar_lea.vmem %s2, %s212
        %v215 = vld [vmem:[%s206] sm:$0xf]
        %v216 = vld [vmem:[%s206 + $0x4] sm:$0x1]
        %v217 = vld [vmem:[%s206 + $0x8] sm:$0xf]
        %v218 = vld [vmem:[%s206 + $0xc] sm:$0x1]
        %v219 = vld [vmem:[%s206 + $0x10] sm:$0xf]
        %v220 = vld [vmem:[%s206 + $0x14] sm:$0x1]
        %v221 = vld [vmem:[%s206 + $0x18] sm:$0xf]
        %v222 = vld [vmem:[%s206 + $0x1c] sm:$0x1]
        %v223 = vld [vmem:[%s206 + $0x20] sm:$0xf]
        %v224 = vld [vmem:[%s206 + $0x24] sm:$0x1]
        %v225 = vld [vmem:[%s206 + $0x28] sm:$0xf]
        %v226 = vld [vmem:[%s206 + $0x2c] sm:$0x1]
        %v227 = vld [vmem:[%s206 + $0x30] sm:$0xf]
        %v228 = vld [vmem:[%s206 + $0x34] sm:$0x1]
        %v229 = vld [vmem:[%s206 + $0x38] sm:$0xf]
        %v230 = vld [vmem:[%s206 + $0x3c] sm:$0x1]
        %v231 = vld [vmem:[%s206 + $0x40] sm:$0xf]
        %v232 = vld [vmem:[%s206 + $0x48] sm:$0xf]
        %v233 = vld [vmem:[%s206 + $0x50] sm:$0xf]
        %v234 = vld [vmem:[%s206 + $0x58] sm:$0xf]
        %v235 = vld [vmem:[%s206 + $0x60] sm:$0xf]
        %v236 = vld [vmem:[%s206 + $0x68] sm:$0xf]
        %v237 = vld [vmem:[%s206 + $0x70] sm:$0xf]
        %v238 = vld [vmem:[%s206 + $0x78] sm:$0xf]
        %v239 = vld [vmem:[%s206 + $0x80] sm:$0xf]
        %v240 = vld [vmem:[%s206 + $0x84] sm:$0x1]
        %v241 = vld [vmem:[%s206 + $0x88] sm:$0xf]
        %v242 = vld [vmem:[%s206 + $0x8c] sm:$0x1]
        %v243 = vld [vmem:[%s206 + $0x90] sm:$0xf]
        %v244 = vld [vmem:[%s206 + $0x94] sm:$0x1]
        %v245 = vld [vmem:[%s206 + $0x98] sm:$0xf]
        %v246 = vld [vmem:[%s206 + $0x9c] sm:$0x1]
        %v247 = vld [vmem:[%s206 + $0xa0] sm:$0xf]
        %v248 = vld [vmem:[%s206 + $0xa4] sm:$0x1]
        %v249 = vld [vmem:[%s206 + $0xa8] sm:$0xf]
        %v250 = vld [vmem:[%s206 + $0xac] sm:$0x1]
        %v251 = vld [vmem:[%s206 + $0xb0] sm:$0xf]
        %v252 = vld [vmem:[%s206 + $0xb4] sm:$0x1]
        %v253 = vld [vmem:[%s206 + $0xc0] sm:$0xf]
        %v254 = vld [vmem:[%s206 + $0xc8] sm:$0xf]
        %v255 = vld [vmem:[%s206 + $0xd0] sm:$0xf]
        %v256 = vld [vmem:[%s206 + $0xd8] sm:$0xf]
        %v257 = vld [vmem:[%s206 + $0xe0] sm:$0xf]
        %v258 = vld [vmem:[%s206 + $0xe8] sm:$0xf]
        %v259 = vld [vmem:[%s206 + $0xf0] sm:$0xf]
        %v260 = vld [vmem:[%s210] sm:$0x3]
        %v261 = vld [vmem:[%s210 + $0x2] sm:$0x3]
        %v262 = vld [vmem:[%s210 + $0x4] sm:$0x3]
        %v263 = vld [vmem:[%s210 + $0x6] sm:$0x3]
        %v264 = vld [vmem:[%s210 + $0x8] sm:$0x3]
        %v265 = vld [vmem:[%s210 + $0xa] sm:$0x3]
        %v266 = vld [vmem:[%s210 + $0xc] sm:$0x3]
        %v267 = vld [vmem:[%s210 + $0xe] sm:$0x3]
        %v268 = vld [vmem:[%s210 + $0x10] sm:$0x3]
        %v269 = vld [vmem:[%s213] sm:$0x1]
        %v271 = vlaneseq
        %v272 = vshrl.u32 %v271, 7
        %v273 = vsub.s32 0, %v272
        %v274 = vrot.slane %v269, %v273
        %v283 = vunpack.c.l.b16 %v215
        %v284 = vunpack.c.l.b16 %v217
        %v285 = vunpack.c.l.b16 %v219
        %v286 = vunpack.c.l.b16 %v221
        %v287 = vunpack.c.l.b16 %v223
        %v288 = vunpack.c.l.b16 %v225
        %v289 = vunpack.c.l.b16 %v227
        %v290 = vpack.c.b16 %v284, %v283
        %v291 = vpack.c.b16 %v286, %v285
        %v292 = vpack.c.b16 %v288, %v287
        %v293 = vpack.c.b16 %v289, %v289
        %vm294 = vcmask 31744
        %v296 = vsel %vm294, %v290, 0
        %v299 = vsel %vm294, %v291, 0
        %v302 = vsel %vm294, %v292, 0
        %v305 = vsel %vm294, %v293, 0
        %vm307 = vcmask 1041408
        %v309 = vsel %vm307, %v260, 0
        %311 = vmatprep.subr.bf16.mxu0 0
        %312 = vmatpush1.bf16.msra.mxu0 0
        %313 = vmatprep.subr.bf16.mxu0 0
        %314 = vmatpush1.bf16.msra.mxu0 0
        %315 = vmatprep.subr.bf16.mxu0 0
        %316 = vmatpush1.bf16.msra.mxu0 0
        %317 = vmatprep.subr.bf16.mxu0 0
        %318 = vmatpush1.bf16.msra.mxu0 0
        %319 = vmatprep.subr.bf16.mxu0 0
        %320 = vmatpush1.bf16.msra.mxu0 0
        %321 = vmatprep.subr.bf16.mxu0 0
        %322 = vmatpush1.bf16.msra.mxu0 0
        %323 = vmatprep.subr.bf16.mxu0 0
        %324 = vmatpush1.bf16.msra.mxu0 0
        %325 = vmatprep.subr.bf16.mxu0 0
        %326 = vmatpush1.bf16.msra.mxu0 %v309
        %327 = vmatprep.subr.bf16.mxu0 0
        %328 = vmatpush2.bf16.msra.mxu0 0
        %329 = vmatprep.subr.bf16.mxu0 0
        %330 = vmatpush2.bf16.msra.mxu0 0
        %331 = vmatprep.subr.bf16.mxu0 0
        %332 = vmatpush2.bf16.msra.mxu0 0
        %333 = vmatprep.subr.bf16.mxu0 0
        %334 = vmatpush2.bf16.msra.mxu0 0
        %335 = vmatprep.subr.bf16.mxu0 0
        %336 = vmatpush2.bf16.msra.mxu0 0
        %337 = vmatprep.subr.bf16.mxu0 0
        %338 = vmatpush2.bf16.msra.mxu0 0
        %339 = vmatprep.subr.bf16.mxu0 0
        %340 = vmatpush2.bf16.msra.mxu0 0
        %341 = vmatprep.subr.bf16.mxu0 0
        %342 = vmatpush2.bf16.msra.mxu0 0
        %343 = vmatprep.mubr.bf16.mxu0 0
        %344 = vmatmul.mubr.bf16.gmra.mxu0 %v296
        %v345 = vpop.f32.mrf.mxu0
        %v346 = vadd.f32 0.0, %v345
        %v347 = vpop.f32.mrf.mxu0
        %v348 = vpop.f32.mrf.mxu0
        %v349 = vadd.f32 0.0, %v348
        %v350 = vpop.f32.mrf.mxu0
        %351 = vmatprep.mubr.bf16.mxu0 0
        %352 = vmatmul.mubr.bf16.gmra.mxu0 %v299
        %v353 = vpop.f32.mrf.mxu0
        %v354 = vadd.f32 0.0, %v353
        %v355 = vpop.f32.mrf.mxu0
        %v356 = vpop.f32.mrf.mxu0
        %v357 = vadd.f32 0.0, %v356
        %v358 = vpop.f32.mrf.mxu0
        %359 = vmatprep.mubr.bf16.mxu0 0
        %360 = vmatmul.mubr.bf16.gmra.mxu0 %v302
        %v361 = vpop.f32.mrf.mxu0
        %v362 = vadd.f32 0.0, %v361
        %v363 = vpop.f32.mrf.mxu0
        %v364 = vpop.f32.mrf.mxu0
        %v365 = vadd.f32 0.0, %v364
        %v366 = vpop.f32.mrf.mxu0
        %367 = vmatprep.mubr.bf16.mxu0 0
        %368 = vmatmul.mubr.bf16.gmra.mxu0 %v305
        %v369 = vpop.f32.mrf.mxu0
        %v370 = vadd.f32 0.0, %v369
        %v371 = vpop.f32.mrf.mxu0
        %v372 = vpop.f32.mrf.mxu0
        %v373 = vpop.f32.mrf.mxu0
        %374 = vdwg.mxu0
        %v375 = vadd.f32 %v274, %v346
        %v376 = vadd.f32 %v274, %v349
        %v377 = vadd.f32 %v274, %v354
        %v378 = vadd.f32 %v274, %v357
        %v379 = vadd.f32 %v274, %v362
        %v380 = vadd.f32 %v274, %v365
        %v381 = vadd.f32 %v274, %v370
        %v389 = vunpack.c.l.b16 %v231
        %v390 = vunpack.c.l.b16 %v232
        %v391 = vunpack.c.l.b16 %v233
        %v392 = vunpack.c.l.b16 %v234
        %v393 = vunpack.c.l.b16 %v235
        %v394 = vunpack.c.l.b16 %v236
        %v395 = vunpack.c.l.b16 %v237
        %v396 = vpack.c.b16 %v390, %v389
        %v397 = vpack.c.b16 %v392, %v391
        %v398 = vpack.c.b16 %v394, %v393
        %v399 = vpack.c.b16 %v395, %v395
        %v401 = vsel %vm294, %v396, 0
        %v404 = vsel %vm294, %v397, 0
        %v407 = vsel %vm294, %v398, 0
        %v410 = vsel %vm294, %v399, 0
        %v413 = vsel %vm307, %v261, 0
        %415 = vmatprep.subr.bf16.mxu0 0
        %416 = vmatpush1.bf16.msra.mxu0 0
        %417 = vmatprep.subr.bf16.mxu0 0
        %418 = vmatpush1.bf16.msra.mxu0 0
        %419 = vmatprep.subr.bf16.mxu0 0
        %420 = vmatpush1.bf16.msra.mxu0 0
        %421 = vmatprep.subr.bf16.mxu0 0
        %422 = vmatpush1.bf16.msra.mxu0 0
        %423 = vmatprep.subr.bf16.mxu0 0
        %424 = vmatpush1.bf16.msra.mxu0 0
        %425 = vmatprep.subr.bf16.mxu0 0
        %426 = vmatpush1.bf16.msra.mxu0 0
        %427 = vmatprep.subr.bf16.mxu0 0
        %428 = vmatpush1.bf16.msra.mxu0 0
        %429 = vmatprep.subr.bf16.mxu0 0
        %430 = vmatpush1.bf16.msra.mxu0 %v413
        %431 = vmatprep.subr.bf16.mxu0 0
        %432 = vmatpush2.bf16.msra.mxu0 0
        %433 = vmatprep.subr.bf16.mxu0 0
        %434 = vmatpush2.bf16.msra.mxu0 0
        %435 = vmatprep.subr.bf16.mxu0 0
        %436 = vmatpush2.bf16.msra.mxu0 0
        %437 = vmatprep.subr.bf16.mxu0 0
        %438 = vmatpush2.bf16.msra.mxu0 0
        %439 = vmatprep.subr.bf16.mxu0 0
        %440 = vmatpush2.bf16.msra.mxu0 0
        %441 = vmatprep.subr.bf16.mxu0 0
        %442 = vmatpush2.bf16.msra.mxu0 0
        %443 = vmatprep.subr.bf16.mxu0 0
        %444 = vmatpush2.bf16.msra.mxu0 0
        %445 = vmatprep.subr.bf16.mxu0 0
        %446 = vmatpush2.bf16.msra.mxu0 0
        %447 = vmatprep.mubr.bf16.mxu0 0
        %448 = vmatmul.mubr.bf16.gmra.mxu0 %v401
        %v449 = vpop.f32.mrf.mxu0
        %v450 = vadd.f32 0.0, %v449
        %v451 = vpop.f32.mrf.mxu0
        %v452 = vpop.f32.mrf.mxu0
        %v453 = vadd.f32 0.0, %v452
        %v454 = vpop.f32.mrf.mxu0
        %455 = vmatprep.mubr.bf16.mxu0 0
        %456 = vmatmul.mubr.bf16.gmra.mxu0 %v404
        %v457 = vpop.f32.mrf.mxu0
        %v458 = vadd.f32 0.0, %v457
        %v459 = vpop.f32.mrf.mxu0
        %v460 = vpop.f32.mrf.mxu0
        %v461 = vadd.f32 0.0, %v460
        %v462 = vpop.f32.mrf.mxu0
        %463 = vmatprep.mubr.bf16.mxu0 0
        %464 = vmatmul.mubr.bf16.gmra.mxu0 %v407
        %v465 = vpop.f32.mrf.mxu0
        %v466 = vadd.f32 0.0, %v465
        %v467 = vpop.f32.mrf.mxu0
        %v468 = vpop.f32.mrf.mxu0
        %v469 = vadd.f32 0.0, %v468
        %v470 = vpop.f32.mrf.mxu0
        %471 = vmatprep.mubr.bf16.mxu0 0
        %472 = vmatmul.mubr.bf16.gmra.mxu0 %v410
        %v473 = vpop.f32.mrf.mxu0
        %v474 = vadd.f32 0.0, %v473
        %v475 = vpop.f32.mrf.mxu0
        %v476 = vpop.f32.mrf.mxu0
        %v477 = vpop.f32.mrf.mxu0
        %478 = vdwg.mxu0
        %v479 = vadd.f32 %v375, %v450
        %v480 = vadd.f32 %v376, %v453
        %v481 = vadd.f32 %v377, %v458
        %v482 = vadd.f32 %v378, %v461
        %v483 = vadd.f32 %v379, %v466
        %v484 = vadd.f32 %v380, %v469
        %v485 = vadd.f32 %v381, %v474
        %vm486 = vsmask.f32 3328
        %vm487 = vsmask.f32 7440
        %vm488 = vmor %vm486, %vm487
        %v490 = vshrl.u32 %v215, 16
        %v492 = vrot.slane %v490, 4
        %v493 = vshll.u32 %v215, 16
        %v495 = vrot.slane %v493, 5
        %v496 = vor.u32 %v492, %v495
        %v497 = vrot.slane %v496, 4
        %v499 = vshll.u32 %v216, 16
        %v501 = vrot.slane %v499, 5
        %v502 = vsel %vm488, %v497, %v501
        %v504 = vshrl.u32 %v217, 16
        %v506 = vrot.slane %v504, 4
        %v507 = vshll.u32 %v217, 16
        %v509 = vrot.slane %v507, 5
        %v510 = vor.u32 %v506, %v509
        %v511 = vrot.slane %v510, 4
        %v513 = vshll.u32 %v218, 16
        %v515 = vrot.slane %v513, 5
        %v516 = vsel %vm488, %v511, %v515
        %v518 = vshrl.u32 %v219, 16
        %v520 = vrot.slane %v518, 4
        %v521 = vshll.u32 %v219, 16
        %v523 = vrot.slane %v521, 5
        %v524 = vor.u32 %v520, %v523
        %v525 = vrot.slane %v524, 4
        %v527 = vshll.u32 %v220, 16
        %v529 = vrot.slane %v527, 5
        %v530 = vsel %vm488, %v525, %v529
        %v532 = vshrl.u32 %v221, 16
        %v534 = vrot.slane %v532, 4
        %v535 = vshll.u32 %v221, 16
        %v537 = vrot.slane %v535, 5
        %v538 = vor.u32 %v534, %v537
        %v539 = vrot.slane %v538, 4
        %v541 = vshll.u32 %v222, 16
        %v543 = vrot.slane %v541, 5
        %v544 = vsel %vm488, %v539, %v543
        %v546 = vshrl.u32 %v223, 16
        %v548 = vrot.slane %v546, 4
        %v549 = vshll.u32 %v223, 16
        %v551 = vrot.slane %v549, 5
        %v552 = vor.u32 %v548, %v551
        %v553 = vrot.slane %v552, 4
        %v555 = vshll.u32 %v224, 16
        %v557 = vrot.slane %v555, 5
        %v558 = vsel %vm488, %v553, %v557
        %v560 = vshrl.u32 %v225, 16
        %v562 = vrot.slane %v560, 4
        %v563 = vshll.u32 %v225, 16
        %v565 = vrot.slane %v563, 5
        %v566 = vor.u32 %v562, %v565
        %v567 = vrot.slane %v566, 4
        %v569 = vshll.u32 %v226, 16
        %v571 = vrot.slane %v569, 5
        %v572 = vsel %vm488, %v567, %v571
        %v574 = vshrl.u32 %v227, 16
        %v576 = vrot.slane %v574, 4
        %v577 = vshll.u32 %v227, 16
        %v579 = vrot.slane %v577, 5
        %v580 = vor.u32 %v576, %v579
        %v581 = vrot.slane %v580, 4
        %v583 = vshll.u32 %v228, 16
        %v585 = vrot.slane %v583, 5
        %v586 = vsel %vm488, %v581, %v585
        %v587 = vunpack.c.l.b16 %v502
        %v588 = vunpack.c.l.b16 %v516
        %v589 = vunpack.c.l.b16 %v530
        %v590 = vunpack.c.l.b16 %v544
        %v591 = vunpack.c.l.b16 %v558
        %v592 = vunpack.c.l.b16 %v572
        %v593 = vunpack.c.l.b16 %v586
        %v594 = vpack.c.b16 %v588, %v587
        %v595 = vpack.c.b16 %v590, %v589
        %v596 = vpack.c.b16 %v592, %v591
        %v597 = vpack.c.b16 %v593, %v593
        %v599 = vsel %vm294, %v594, 0
        %v602 = vsel %vm294, %v595, 0
        %v605 = vsel %vm294, %v596, 0
        %v608 = vsel %vm294, %v597, 0
        %v611 = vsel %vm307, %v262, 0
        %613 = vmatprep.subr.bf16.mxu0 0
        %614 = vmatpush1.bf16.msra.mxu0 0
        %615 = vmatprep.subr.bf16.mxu0 0
        %616 = vmatpush1.bf16.msra.mxu0 0
        %617 = vmatprep.subr.bf16.mxu0 0
        %618 = vmatpush1.bf16.msra.mxu0 0
        %619 = vmatprep.subr.bf16.mxu0 0
        %620 = vmatpush1.bf16.msra.mxu0 0
        %621 = vmatprep.subr.bf16.mxu0 0
        %622 = vmatpush1.bf16.msra.mxu0 0
        %623 = vmatprep.subr.bf16.mxu0 0
        %624 = vmatpush1.bf16.msra.mxu0 0
        %625 = vmatprep.subr.bf16.mxu0 0
        %626 = vmatpush1.bf16.msra.mxu0 0
        %627 = vmatprep.subr.bf16.mxu0 0
        %628 = vmatpush1.bf16.msra.mxu0 %v611
        %629 = vmatprep.subr.bf16.mxu0 0
        %630 = vmatpush2.bf16.msra.mxu0 0
        %631 = vmatprep.subr.bf16.mxu0 0
        %632 = vmatpush2.bf16.msra.mxu0 0
        %633 = vmatprep.subr.bf16.mxu0 0
        %634 = vmatpush2.bf16.msra.mxu0 0
        %635 = vmatprep.subr.bf16.mxu0 0
        %636 = vmatpush2.bf16.msra.mxu0 0
        %637 = vmatprep.subr.bf16.mxu0 0
        %638 = vmatpush2.bf16.msra.mxu0 0
        %639 = vmatprep.subr.bf16.mxu0 0
        %640 = vmatpush2.bf16.msra.mxu0 0
        %641 = vmatprep.subr.bf16.mxu0 0
        %642 = vmatpush2.bf16.msra.mxu0 0
        %643 = vmatprep.subr.bf16.mxu0 0
        %644 = vmatpush2.bf16.msra.mxu0 0
        %645 = vmatprep.mubr.bf16.mxu0 0
        %646 = vmatmul.mubr.bf16.gmra.mxu0 %v599
        %v647 = vpop.f32.mrf.mxu0
        %v648 = vadd.f32 0.0, %v647
        %v649 = vpop.f32.mrf.mxu0
        %v650 = vpop.f32.mrf.mxu0
        %v651 = vadd.f32 0.0, %v650
        %v652 = vpop.f32.mrf.mxu0
        %653 = vmatprep.mubr.bf16.mxu0 0
        %654 = vmatmul.mubr.bf16.gmra.mxu0 %v602
        %v655 = vpop.f32.mrf.mxu0
        %v656 = vadd.f32 0.0, %v655
        %v657 = vpop.f32.mrf.mxu0
        %v658 = vpop.f32.mrf.mxu0
        %v659 = vadd.f32 0.0, %v658
        %v660 = vpop.f32.mrf.mxu0
        %661 = vmatprep.mubr.bf16.mxu0 0
        %662 = vmatmul.mubr.bf16.gmra.mxu0 %v605
        %v663 = vpop.f32.mrf.mxu0
        %v664 = vadd.f32 0.0, %v663
        %v665 = vpop.f32.mrf.mxu0
        %v666 = vpop.f32.mrf.mxu0
        %v667 = vadd.f32 0.0, %v666
        %v668 = vpop.f32.mrf.mxu0
        %669 = vmatprep.mubr.bf16.mxu0 0
        %670 = vmatmul.mubr.bf16.gmra.mxu0 %v608
        %v671 = vpop.f32.mrf.mxu0
        %v672 = vadd.f32 0.0, %v671
        %v673 = vpop.f32.mrf.mxu0
        %v674 = vpop.f32.mrf.mxu0
        %v675 = vpop.f32.mrf.mxu0
        %676 = vdwg.mxu0
        %v677 = vadd.f32 %v479, %v648
        %v678 = vadd.f32 %v480, %v651
        %v679 = vadd.f32 %v481, %v656
        %v680 = vadd.f32 %v482, %v659
        %v681 = vadd.f32 %v483, %v664
        %v682 = vadd.f32 %v484, %v667
        %v683 = vadd.f32 %v485, %v672
        %v691 = vunpack.c.l.b16 %v239
        %v692 = vunpack.c.l.b16 %v241
        %v693 = vunpack.c.l.b16 %v243
        %v694 = vunpack.c.l.b16 %v245
        %v695 = vunpack.c.l.b16 %v247
        %v696 = vunpack.c.l.b16 %v249
        %v697 = vunpack.c.l.b16 %v251
        %v698 = vpack.c.b16 %v692, %v691
        %v699 = vpack.c.b16 %v694, %v693
        %v700 = vpack.c.b16 %v696, %v695
        %v701 = vpack.c.b16 %v697, %v697
        %v703 = vsel %vm294, %v698, 0
        %v706 = vsel %vm294, %v699, 0
        %v709 = vsel %vm294, %v700, 0
        %v712 = vsel %vm294, %v701, 0
        %v715 = vsel %vm307, %v263, 0
        %717 = vmatprep.subr.bf16.mxu0 0
        %718 = vmatpush1.bf16.msra.mxu0 0
        %719 = vmatprep.subr.bf16.mxu0 0
        %720 = vmatpush1.bf16.msra.mxu0 0
        %721 = vmatprep.subr.bf16.mxu0 0
        %722 = vmatpush1.bf16.msra.mxu0 0
        %723 = vmatprep.subr.bf16.mxu0 0
        %724 = vmatpush1.bf16.msra.mxu0 0
        %725 = vmatprep.subr.bf16.mxu0 0
        %726 = vmatpush1.bf16.msra.mxu0 0
        %727 = vmatprep.subr.bf16.mxu0 0
        %728 = vmatpush1.bf16.msra.mxu0 0
        %729 = vmatprep.subr.bf16.mxu0 0
        %730 = vmatpush1.bf16.msra.mxu0 0
        %731 = vmatprep.subr.bf16.mxu0 0
        %732 = vmatpush1.bf16.msra.mxu0 %v715
        %733 = vmatprep.subr.bf16.mxu0 0
        %734 = vmatpush2.bf16.msra.mxu0 0
        %735 = vmatprep.subr.bf16.mxu0 0
        %736 = vmatpush2.bf16.msra.mxu0 0
        %737 = vmatprep.subr.bf16.mxu0 0
        %738 = vmatpush2.bf16.msra.mxu0 0
        %739 = vmatprep.subr.bf16.mxu0 0
        %740 = vmatpush2.bf16.msra.mxu0 0
        %741 = vmatprep.subr.bf16.mxu0 0
        %742 = vmatpush2.bf16.msra.mxu0 0
        %743 = vmatprep.subr.bf16.mxu0 0
        %744 = vmatpush2.bf16.msra.mxu0 0
        %745 = vmatprep.subr.bf16.mxu0 0
        %746 = vmatpush2.bf16.msra.mxu0 0
        %747 = vmatprep.subr.bf16.mxu0 0
        %748 = vmatpush2.bf16.msra.mxu0 0
        %749 = vmatprep.mubr.bf16.mxu0 0
        %750 = vmatmul.mubr.bf16.gmra.mxu0 %v703
        %v751 = vpop.f32.mrf.mxu0
        %v752 = vadd.f32 0.0, %v751
        %v753 = vpop.f32.mrf.mxu0
        %v754 = vpop.f32.mrf.mxu0
        %v755 = vadd.f32 0.0, %v754
        %v756 = vpop.f32.mrf.mxu0
        %757 = vmatprep.mubr.bf16.mxu0 0
        %758 = vmatmul.mubr.bf16.gmra.mxu0 %v706
        %v759 = vpop.f32.mrf.mxu0
        %v760 = vadd.f32 0.0, %v759
        %v761 = vpop.f32.mrf.mxu0
        %v762 = vpop.f32.mrf.mxu0
        %v763 = vadd.f32 0.0, %v762
        %v764 = vpop.f32.mrf.mxu0
        %765 = vmatprep.mubr.bf16.mxu0 0
        %766 = vmatmul.mubr.bf16.gmra.mxu0 %v709
        %v767 = vpop.f32.mrf.mxu0
        %v768 = vadd.f32 0.0, %v767
        %v769 = vpop.f32.mrf.mxu0
        %v770 = vpop.f32.mrf.mxu0
        %v771 = vadd.f32 0.0, %v770
        %v772 = vpop.f32.mrf.mxu0
        %773 = vmatprep.mubr.bf16.mxu0 0
        %774 = vmatmul.mubr.bf16.gmra.mxu0 %v712
        %v775 = vpop.f32.mrf.mxu0
        %v776 = vadd.f32 0.0, %v775
        %v777 = vpop.f32.mrf.mxu0
        %v778 = vpop.f32.mrf.mxu0
        %v779 = vpop.f32.mrf.mxu0
        %780 = vdwg.mxu0
        %v781 = vadd.f32 %v677, %v752
        %v782 = vadd.f32 %v678, %v755
        %v783 = vadd.f32 %v679, %v760
        %v784 = vadd.f32 %v680, %v763
        %v785 = vadd.f32 %v681, %v768
        %v786 = vadd.f32 %v682, %v771
        %v787 = vadd.f32 %v683, %v776
        %v795 = vunpack.c.l.b16 %v253
        %v796 = vunpack.c.l.b16 %v254
        %v797 = vunpack.c.l.b16 %v255
        %v798 = vunpack.c.l.b16 %v256
        %v799 = vunpack.c.l.b16 %v257
        %v800 = vunpack.c.l.b16 %v258
        %v801 = vunpack.c.l.b16 %v259
        %v802 = vpack.c.b16 %v796, %v795
        %v803 = vpack.c.b16 %v798, %v797
        %v804 = vpack.c.b16 %v800, %v799
        %v805 = vpack.c.b16 %v801, %v801
        %v807 = vsel %vm294, %v802, 0
        %v810 = vsel %vm294, %v803, 0
        %v813 = vsel %vm294, %v804, 0
        %v816 = vsel %vm294, %v805, 0
        %v819 = vsel %vm307, %v264, 0
        %821 = vmatprep.subr.bf16.mxu0 0
        %822 = vmatpush1.bf16.msra.mxu0 0
        %823 = vmatprep.subr.bf16.mxu0 0
        %824 = vmatpush1.bf16.msra.mxu0 0
        %825 = vmatprep.subr.bf16.mxu0 0
        %826 = vmatpush1.bf16.msra.mxu0 0
        %827 = vmatprep.subr.bf16.mxu0 0
        %828 = vmatpush1.bf16.msra.mxu0 0
        %829 = vmatprep.subr.bf16.mxu0 0
        %830 = vmatpush1.bf16.msra.mxu0 0
        %831 = vmatprep.subr.bf16.mxu0 0
        %832 = vmatpush1.bf16.msra.mxu0 0
        %833 = vmatprep.subr.bf16.mxu0 0
        %834 = vmatpush1.bf16.msra.mxu0 0
        %835 = vmatprep.subr.bf16.mxu0 0
        %836 = vmatpush1.bf16.msra.mxu0 %v819
        %837 = vmatprep.subr.bf16.mxu0 0
        %838 = vmatpush2.bf16.msra.mxu0 0
        %839 = vmatprep.subr.bf16.mxu0 0
        %840 = vmatpush2.bf16.msra.mxu0 0
        %841 = vmatprep.subr.bf16.mxu0 0
        %842 = vmatpush2.bf16.msra.mxu0 0
        %843 = vmatprep.subr.bf16.mxu0 0
        %844 = vmatpush2.bf16.msra.mxu0 0
        %845 = vmatprep.subr.bf16.mxu0 0
        %846 = vmatpush2.bf16.msra.mxu0 0
        %847 = vmatprep.subr.bf16.mxu0 0
        %848 = vmatpush2.bf16.msra.mxu0 0
        %849 = vmatprep.subr.bf16.mxu0 0
        %850 = vmatpush2.bf16.msra.mxu0 0
        %851 = vmatprep.subr.bf16.mxu0 0
        %852 = vmatpush2.bf16.msra.mxu0 0
        %853 = vmatprep.mubr.bf16.mxu0 0
        %854 = vmatmul.mubr.bf16.gmra.mxu0 %v807
        %v855 = vpop.f32.mrf.mxu0
        %v856 = vadd.f32 0.0, %v855
        %v857 = vpop.f32.mrf.mxu0
        %v858 = vpop.f32.mrf.mxu0
        %v859 = vadd.f32 0.0, %v858
        %v860 = vpop.f32.mrf.mxu0
        %861 = vmatprep.mubr.bf16.mxu0 0
        %862 = vmatmul.mubr.bf16.gmra.mxu0 %v810
        %v863 = vpop.f32.mrf.mxu0
        %v864 = vadd.f32 0.0, %v863
        %v865 = vpop.f32.mrf.mxu0
        %v866 = vpop.f32.mrf.mxu0
        %v867 = vadd.f32 0.0, %v866
        %v868 = vpop.f32.mrf.mxu0
        %869 = vmatprep.mubr.bf16.mxu0 0
        %870 = vmatmul.mubr.bf16.gmra.mxu0 %v813
        %v871 = vpop.f32.mrf.mxu0
        %v872 = vadd.f32 0.0, %v871
        %v873 = vpop.f32.mrf.mxu0
        %v874 = vpop.f32.mrf.mxu0
        %v875 = vadd.f32 0.0, %v874
        %v876 = vpop.f32.mrf.mxu0
        %877 = vmatprep.mubr.bf16.mxu0 0
        %878 = vmatmul.mubr.bf16.gmra.mxu0 %v816
        %v879 = vpop.f32.mrf.mxu0
        %v880 = vadd.f32 0.0, %v879
        %v881 = vpop.f32.mrf.mxu0
        %v882 = vpop.f32.mrf.mxu0
        %v883 = vpop.f32.mrf.mxu0
        %884 = vdwg.mxu0
        %v885 = vadd.f32 %v781, %v856
        %v886 = vadd.f32 %v782, %v859
        %v887 = vadd.f32 %v783, %v864
        %v888 = vadd.f32 %v784, %v867
        %v889 = vadd.f32 %v785, %v872
        %v890 = vadd.f32 %v786, %v875
        %v891 = vadd.f32 %v787, %v880
        %v893 = vshrl.u32 %v239, 16
        %v895 = vrot.slane %v893, 4
        %v896 = vshll.u32 %v239, 16
        %v898 = vrot.slane %v896, 5
        %v899 = vor.u32 %v895, %v898
        %v900 = vrot.slane %v899, 4
        %v902 = vshll.u32 %v240, 16
        %v904 = vrot.slane %v902, 5
        %v905 = vsel %vm488, %v900, %v904
        %v907 = vshrl.u32 %v241, 16
        %v909 = vrot.slane %v907, 4
        %v910 = vshll.u32 %v241, 16
        %v912 = vrot.slane %v910, 5
        %v913 = vor.u32 %v909, %v912
        %v914 = vrot.slane %v913, 4
        %v916 = vshll.u32 %v242, 16
        %v918 = vrot.slane %v916, 5
        %v919 = vsel %vm488, %v914, %v918
        %v921 = vshrl.u32 %v243, 16
        %v923 = vrot.slane %v921, 4
        %v924 = vshll.u32 %v243, 16
        %v926 = vrot.slane %v924, 5
        %v927 = vor.u32 %v923, %v926
        %v928 = vrot.slane %v927, 4
        %v930 = vshll.u32 %v244, 16
        %v932 = vrot.slane %v930, 5
        %v933 = vsel %vm488, %v928, %v932
        %v935 = vshrl.u32 %v245, 16
        %v937 = vrot.slane %v935, 4
        %v938 = vshll.u32 %v245, 16
        %v940 = vrot.slane %v938, 5
        %v941 = vor.u32 %v937, %v940
        %v942 = vrot.slane %v941, 4
        %v944 = vshll.u32 %v246, 16
        %v946 = vrot.slane %v944, 5
        %v947 = vsel %vm488, %v942, %v946
        %v949 = vshrl.u32 %v247, 16
        %v951 = vrot.slane %v949, 4
        %v952 = vshll.u32 %v247, 16
        %v954 = vrot.slane %v952, 5
        %v955 = vor.u32 %v951, %v954
        %v956 = vrot.slane %v955, 4
        %v958 = vshll.u32 %v248, 16
        %v960 = vrot.slane %v958, 5
        %v961 = vsel %vm488, %v956, %v960
        %v963 = vshrl.u32 %v249, 16
        %v965 = vrot.slane %v963, 4
        %v966 = vshll.u32 %v249, 16
        %v968 = vrot.slane %v966, 5
        %v969 = vor.u32 %v965, %v968
        %v970 = vrot.slane %v969, 4
        %v972 = vshll.u32 %v250, 16
        %v974 = vrot.slane %v972, 5
        %v975 = vsel %vm488, %v970, %v974
        %v977 = vshrl.u32 %v251, 16
        %v979 = vrot.slane %v977, 4
        %v980 = vshll.u32 %v251, 16
        %v982 = vrot.slane %v980, 5
        %v983 = vor.u32 %v979, %v982
        %v984 = vrot.slane %v983, 4
        %v986 = vshll.u32 %v252, 16
        %v988 = vrot.slane %v986, 5
        %v989 = vsel %vm488, %v984, %v988
        %v990 = vunpack.c.l.b16 %v905
        %v991 = vunpack.c.l.b16 %v919
        %v992 = vunpack.c.l.b16 %v933
        %v993 = vunpack.c.l.b16 %v947
        %v994 = vunpack.c.l.b16 %v961
        %v995 = vunpack.c.l.b16 %v975
        %v996 = vunpack.c.l.b16 %v989
        %v997 = vpack.c.b16 %v991, %v990
        %v998 = vpack.c.b16 %v993, %v992
        %v999 = vpack.c.b16 %v995, %v994
        %v1000 = vpack.c.b16 %v996, %v996
        %v1002 = vsel %vm294, %v997, 0
        %v1005 = vsel %vm294, %v998, 0
        %v1008 = vsel %vm294, %v999, 0
        %v1011 = vsel %vm294, %v1000, 0
        %v1014 = vsel %vm307, %v265, 0
        %1016 = vmatprep.subr.bf16.mxu0 0
        %1017 = vmatpush1.bf16.msra.mxu0 0
        %1018 = vmatprep.subr.bf16.mxu0 0
        %1019 = vmatpush1.bf16.msra.mxu0 0
        %1020 = vmatprep.subr.bf16.mxu0 0
        %1021 = vmatpush1.bf16.msra.mxu0 0
        %1022 = vmatprep.subr.bf16.mxu0 0
        %1023 = vmatpush1.bf16.msra.mxu0 0
        %1024 = vmatprep.subr.bf16.mxu0 0
        %1025 = vmatpush1.bf16.msra.mxu0 0
        %1026 = vmatprep.subr.bf16.mxu0 0
        %1027 = vmatpush1.bf16.msra.mxu0 0
        %1028 = vmatprep.subr.bf16.mxu0 0
        %1029 = vmatpush1.bf16.msra.mxu0 0
        %1030 = vmatprep.subr.bf16.mxu0 0
        %1031 = vmatpush1.bf16.msra.mxu0 %v1014
        %1032 = vmatprep.subr.bf16.mxu0 0
        %1033 = vmatpush2.bf16.msra.mxu0 0
        %1034 = vmatprep.subr.bf16.mxu0 0
        %1035 = vmatpush2.bf16.msra.mxu0 0
        %1036 = vmatprep.subr.bf16.mxu0 0
        %1037 = vmatpush2.bf16.msra.mxu0 0
        %1038 = vmatprep.subr.bf16.mxu0 0
        %1039 = vmatpush2.bf16.msra.mxu0 0
        %1040 = vmatprep.subr.bf16.mxu0 0
        %1041 = vmatpush2.bf16.msra.mxu0 0
        %1042 = vmatprep.subr.bf16.mxu0 0
        %1043 = vmatpush2.bf16.msra.mxu0 0
        %1044 = vmatprep.subr.bf16.mxu0 0
        %1045 = vmatpush2.bf16.msra.mxu0 0
        %1046 = vmatprep.subr.bf16.mxu0 0
        %1047 = vmatpush2.bf16.msra.mxu0 0
        %1048 = vmatprep.mubr.bf16.mxu0 0
        %1049 = vmatmul.mubr.bf16.gmra.mxu0 %v1002
        %v1050 = vpop.f32.mrf.mxu0
        %v1051 = vadd.f32 0.0, %v1050
        %v1052 = vpop.f32.mrf.mxu0
        %v1053 = vpop.f32.mrf.mxu0
        %v1054 = vadd.f32 0.0, %v1053
        %v1055 = vpop.f32.mrf.mxu0
        %1056 = vmatprep.mubr.bf16.mxu0 0
        %1057 = vmatmul.mubr.bf16.gmra.mxu0 %v1005
        %v1058 = vpop.f32.mrf.mxu0
        %v1059 = vadd.f32 0.0, %v1058
        %v1060 = vpop.f32.mrf.mxu0
        %v1061 = vpop.f32.mrf.mxu0
        %v1062 = vadd.f32 0.0, %v1061
        %v1063 = vpop.f32.mrf.mxu0
        %1064 = vmatprep.mubr.bf16.mxu0 0
        %1065 = vmatmul.mubr.bf16.gmra.mxu0 %v1008
        %v1066 = vpop.f32.mrf.mxu0
        %v1067 = vadd.f32 0.0, %v1066
        %v1068 = vpop.f32.mrf.mxu0
        %v1069 = vpop.f32.mrf.mxu0
        %v1070 = vadd.f32 0.0, %v1069
        %v1071 = vpop.f32.mrf.mxu0
        %1072 = vmatprep.mubr.bf16.mxu0 0
        %1073 = vmatmul.mubr.bf16.gmra.mxu0 %v1011
        %v1074 = vpop.f32.mrf.mxu0
        %v1075 = vadd.f32 0.0, %v1074
        %v1076 = vpop.f32.mrf.mxu0
        %v1077 = vpop.f32.mrf.mxu0
        %v1078 = vpop.f32.mrf.mxu0
        %1079 = vdwg.mxu0
        %v1080 = vadd.f32 %v885, %v1051
        %v1081 = vadd.f32 %v886, %v1054
        %v1082 = vadd.f32 %v887, %v1059
        %v1083 = vadd.f32 %v888, %v1062
        %v1084 = vadd.f32 %v889, %v1067
        %v1085 = vadd.f32 %v890, %v1070
        %v1086 = vadd.f32 %v891, %v1075
        %v1088 = vunpack.c.l.b16 %v229
        %v1089 = vpack.c.b16 %v285, %v284
        %v1090 = vpack.c.b16 %v287, %v286
        %v1091 = vpack.c.b16 %v289, %v288
        %v1092 = vpack.c.b16 %v1088, %v1088
        %v1094 = vsel %vm294, %v1089, 0
        %v1097 = vsel %vm294, %v1090, 0
        %v1100 = vsel %vm294, %v1091, 0
        %v1103 = vsel %vm294, %v1092, 0
        %v1106 = vsel %vm307, %v266, 0
        %1108 = vmatprep.subr.bf16.mxu0 0
        %1109 = vmatpush1.bf16.msra.mxu0 0
        %1110 = vmatprep.subr.bf16.mxu0 0
        %1111 = vmatpush1.bf16.msra.mxu0 0
        %1112 = vmatprep.subr.bf16.mxu0 0
        %1113 = vmatpush1.bf16.msra.mxu0 0
        %1114 = vmatprep.subr.bf16.mxu0 0
        %1115 = vmatpush1.bf16.msra.mxu0 0
        %1116 = vmatprep.subr.bf16.mxu0 0
        %1117 = vmatpush1.bf16.msra.mxu0 0
        %1118 = vmatprep.subr.bf16.mxu0 0
        %1119 = vmatpush1.bf16.msra.mxu0 0
        %1120 = vmatprep.subr.bf16.mxu0 0
        %1121 = vmatpush1.bf16.msra.mxu0 0
        %1122 = vmatprep.subr.bf16.mxu0 0
        %1123 = vmatpush1.bf16.msra.mxu0 %v1106
        %1124 = vmatprep.subr.bf16.mxu0 0
        %1125 = vmatpush2.bf16.msra.mxu0 0
        %1126 = vmatprep.subr.bf16.mxu0 0
        %1127 = vmatpush2.bf16.msra.mxu0 0
        %1128 = vmatprep.subr.bf16.mxu0 0
        %1129 = vmatpush2.bf16.msra.mxu0 0
        %1130 = vmatprep.subr.bf16.mxu0 0
        %1131 = vmatpush2.bf16.msra.mxu0 0
        %1132 = vmatprep.subr.bf16.mxu0 0
        %1133 = vmatpush2.bf16.msra.mxu0 0
        %1134 = vmatprep.subr.bf16.mxu0 0
        %1135 = vmatpush2.bf16.msra.mxu0 0
        %1136 = vmatprep.subr.bf16.mxu0 0
        %1137 = vmatpush2.bf16.msra.mxu0 0
        %1138 = vmatprep.subr.bf16.mxu0 0
        %1139 = vmatpush2.bf16.msra.mxu0 0
        %1140 = vmatprep.mubr.bf16.mxu0 0
        %1141 = vmatmul.mubr.bf16.gmra.mxu0 %v1094
        %v1142 = vpop.f32.mrf.mxu0
        %v1143 = vadd.f32 0.0, %v1142
        %v1144 = vpop.f32.mrf.mxu0
        %v1145 = vpop.f32.mrf.mxu0
        %v1146 = vadd.f32 0.0, %v1145
        %v1147 = vpop.f32.mrf.mxu0
        %1148 = vmatprep.mubr.bf16.mxu0 0
        %1149 = vmatmul.mubr.bf16.gmra.mxu0 %v1097
        %v1150 = vpop.f32.mrf.mxu0
        %v1151 = vadd.f32 0.0, %v1150
        %v1152 = vpop.f32.mrf.mxu0
        %v1153 = vpop.f32.mrf.mxu0
        %v1154 = vadd.f32 0.0, %v1153
        %v1155 = vpop.f32.mrf.mxu0
        %1156 = vmatprep.mubr.bf16.mxu0 0
        %1157 = vmatmul.mubr.bf16.gmra.mxu0 %v1100
        %v1158 = vpop.f32.mrf.mxu0
        %v1159 = vadd.f32 0.0, %v1158
        %v1160 = vpop.f32.mrf.mxu0
        %v1161 = vpop.f32.mrf.mxu0
        %v1162 = vadd.f32 0.0, %v1161
        %v1163 = vpop.f32.mrf.mxu0
        %1164 = vmatprep.mubr.bf16.mxu0 0
        %1165 = vmatmul.mubr.bf16.gmra.mxu0 %v1103
        %v1166 = vpop.f32.mrf.mxu0
        %v1167 = vadd.f32 0.0, %v1166
        %v1168 = vpop.f32.mrf.mxu0
        %v1169 = vpop.f32.mrf.mxu0
        %v1170 = vpop.f32.mrf.mxu0
        %1171 = vdwg.mxu0
        %v1172 = vadd.f32 %v1080, %v1143
        %v1173 = vadd.f32 %v1081, %v1146
        %v1174 = vadd.f32 %v1082, %v1151
        %v1175 = vadd.f32 %v1083, %v1154
        %v1176 = vadd.f32 %v1084, %v1159
        %v1177 = vadd.f32 %v1085, %v1162
        %v1178 = vadd.f32 %v1086, %v1167
        %v1180 = vunpack.c.l.b16 %v238
        %v1181 = vpack.c.b16 %v391, %v390
        %v1182 = vpack.c.b16 %v393, %v392
        %v1183 = vpack.c.b16 %v395, %v394
        %v1184 = vpack.c.b16 %v1180, %v1180
        %v1186 = vsel %vm294, %v1181, 0
        %v1189 = vsel %vm294, %v1182, 0
        %v1192 = vsel %vm294, %v1183, 0
        %v1195 = vsel %vm294, %v1184, 0
        %v1198 = vsel %vm307, %v267, 0
        %1200 = vmatprep.subr.bf16.mxu0 0
        %1201 = vmatpush1.bf16.msra.mxu0 0
        %1202 = vmatprep.subr.bf16.mxu0 0
        %1203 = vmatpush1.bf16.msra.mxu0 0
        %1204 = vmatprep.subr.bf16.mxu0 0
        %1205 = vmatpush1.bf16.msra.mxu0 0
        %1206 = vmatprep.subr.bf16.mxu0 0
        %1207 = vmatpush1.bf16.msra.mxu0 0
        %1208 = vmatprep.subr.bf16.mxu0 0
        %1209 = vmatpush1.bf16.msra.mxu0 0
        %1210 = vmatprep.subr.bf16.mxu0 0
        %1211 = vmatpush1.bf16.msra.mxu0 0
        %1212 = vmatprep.subr.bf16.mxu0 0
        %1213 = vmatpush1.bf16.msra.mxu0 0
        %1214 = vmatprep.subr.bf16.mxu0 0
        %1215 = vmatpush1.bf16.msra.mxu0 %v1198
        %1216 = vmatprep.subr.bf16.mxu0 0
        %1217 = vmatpush2.bf16.msra.mxu0 0
        %1218 = vmatprep.subr.bf16.mxu0 0
        %1219 = vmatpush2.bf16.msra.mxu0 0
        %1220 = vmatprep.subr.bf16.mxu0 0
        %1221 = vmatpush2.bf16.msra.mxu0 0
        %1222 = vmatprep.subr.bf16.mxu0 0
        %1223 = vmatpush2.bf16.msra.mxu0 0
        %1224 = vmatprep.subr.bf16.mxu0 0
        %1225 = vmatpush2.bf16.msra.mxu0 0
        %1226 = vmatprep.subr.bf16.mxu0 0
        %1227 = vmatpush2.bf16.msra.mxu0 0
        %1228 = vmatprep.subr.bf16.mxu0 0
        %1229 = vmatpush2.bf16.msra.mxu0 0
        %1230 = vmatprep.subr.bf16.mxu0 0
        %1231 = vmatpush2.bf16.msra.mxu0 0
        %1232 = vmatprep.mubr.bf16.mxu0 0
        %1233 = vmatmul.mubr.bf16.gmra.mxu0 %v1186
        %v1234 = vpop.f32.mrf.mxu0
        %v1235 = vadd.f32 0.0, %v1234
        %v1236 = vpop.f32.mrf.mxu0
        %v1237 = vpop.f32.mrf.mxu0
        %v1238 = vadd.f32 0.0, %v1237
        %v1239 = vpop.f32.mrf.mxu0
        %1240 = vmatprep.mubr.bf16.mxu0 0
        %1241 = vmatmul.mubr.bf16.gmra.mxu0 %v1189
        %v1242 = vpop.f32.mrf.mxu0
        %v1243 = vadd.f32 0.0, %v1242
        %v1244 = vpop.f32.mrf.mxu0
        %v1245 = vpop.f32.mrf.mxu0
        %v1246 = vadd.f32 0.0, %v1245
        %v1247 = vpop.f32.mrf.mxu0
        %1248 = vmatprep.mubr.bf16.mxu0 0
        %1249 = vmatmul.mubr.bf16.gmra.mxu0 %v1192
        %v1250 = vpop.f32.mrf.mxu0
        %v1251 = vadd.f32 0.0, %v1250
        %v1252 = vpop.f32.mrf.mxu0
        %v1253 = vpop.f32.mrf.mxu0
        %v1254 = vadd.f32 0.0, %v1253
        %v1255 = vpop.f32.mrf.mxu0
        %1256 = vmatprep.mubr.bf16.mxu0 0
        %1257 = vmatmul.mubr.bf16.gmra.mxu0 %v1195
        %v1258 = vpop.f32.mrf.mxu0
        %v1259 = vadd.f32 0.0, %v1258
        %v1260 = vpop.f32.mrf.mxu0
        %v1261 = vpop.f32.mrf.mxu0
        %v1262 = vpop.f32.mrf.mxu0
        %1263 = vdwg.mxu0
        %v1264 = vadd.f32 %v1172, %v1235
        %v1265 = vadd.f32 %v1173, %v1238
        %v1266 = vadd.f32 %v1174, %v1243
        %v1267 = vadd.f32 %v1175, %v1246
        %v1268 = vadd.f32 %v1176, %v1251
        %v1269 = vadd.f32 %v1177, %v1254
        %v1270 = vadd.f32 %v1178, %v1259
        %v1272 = vshrl.u32 %v229, 16
        %v1274 = vrot.slane %v1272, 4
        %v1275 = vshll.u32 %v229, 16
        %v1277 = vrot.slane %v1275, 5
        %v1278 = vor.u32 %v1274, %v1277
        %v1279 = vrot.slane %v1278, 4
        %v1281 = vshll.u32 %v230, 16
        %v1283 = vrot.slane %v1281, 5
        %v1284 = vsel %vm488, %v1279, %v1283
        %v1285 = vunpack.c.l.b16 %v1284
        %v1286 = vpack.c.b16 %v589, %v588
        %v1287 = vpack.c.b16 %v591, %v590
        %v1288 = vpack.c.b16 %v593, %v592
        %v1289 = vpack.c.b16 %v1285, %v1285
        %v1291 = vsel %vm294, %v1286, 0
        %v1294 = vsel %vm294, %v1287, 0
        %v1297 = vsel %vm294, %v1288, 0
        %v1300 = vsel %vm294, %v1289, 0
        %v1303 = vsel %vm307, %v268, 0
        %1305 = vmatprep.subr.bf16.mxu0 0
        %1306 = vmatpush1.bf16.msra.mxu0 0
        %1307 = vmatprep.subr.bf16.mxu0 0
        %1308 = vmatpush1.bf16.msra.mxu0 0
        %1309 = vmatprep.subr.bf16.mxu0 0
        %1310 = vmatpush1.bf16.msra.mxu0 0
        %1311 = vmatprep.subr.bf16.mxu0 0
        %1312 = vmatpush1.bf16.msra.mxu0 0
        %1313 = vmatprep.subr.bf16.mxu0 0
        %1314 = vmatpush1.bf16.msra.mxu0 0
        %1315 = vmatprep.subr.bf16.mxu0 0
        %1316 = vmatpush1.bf16.msra.mxu0 0
        %1317 = vmatprep.subr.bf16.mxu0 0
        %1318 = vmatpush1.bf16.msra.mxu0 0
        %1319 = vmatprep.subr.bf16.mxu0 0
        %1320 = vmatpush1.bf16.msra.mxu0 %v1303
        %1321 = vmatprep.subr.bf16.mxu0 0
        %1322 = vmatpush2.bf16.msra.mxu0 0
        %1323 = vmatprep.subr.bf16.mxu0 0
        %1324 = vmatpush2.bf16.msra.mxu0 0
        %1325 = vmatprep.subr.bf16.mxu0 0
        %1326 = vmatpush2.bf16.msra.mxu0 0
        %1327 = vmatprep.subr.bf16.mxu0 0
        %1328 = vmatpush2.bf16.msra.mxu0 0
        %1329 = vmatprep.subr.bf16.mxu0 0
        %1330 = vmatpush2.bf16.msra.mxu0 0
        %1331 = vmatprep.subr.bf16.mxu0 0
        %1332 = vmatpush2.bf16.msra.mxu0 0
        %1333 = vmatprep.subr.bf16.mxu0 0
        %1334 = vmatpush2.bf16.msra.mxu0 0
        %1335 = vmatprep.subr.bf16.mxu0 0
        %1336 = vmatpush2.bf16.msra.mxu0 0
        %1337 = vmatprep.mubr.bf16.mxu0 0
        %1338 = vmatmul.mubr.bf16.gmra.mxu0 %v1291
        %v1339 = vpop.f32.mrf.mxu0
        %v1340 = vadd.f32 0.0, %v1339
        %v1341 = vpop.f32.mrf.mxu0
        %v1342 = vpop.f32.mrf.mxu0
        %v1343 = vadd.f32 0.0, %v1342
        %v1344 = vpop.f32.mrf.mxu0
        %1345 = vmatprep.mubr.bf16.mxu0 0
        %1346 = vmatmul.mubr.bf16.gmra.mxu0 %v1294
        %v1347 = vpop.f32.mrf.mxu0
        %v1348 = vadd.f32 0.0, %v1347
        %v1349 = vpop.f32.mrf.mxu0
        %v1350 = vpop.f32.mrf.mxu0
        %v1351 = vadd.f32 0.0, %v1350
        %v1352 = vpop.f32.mrf.mxu0
        %1353 = vmatprep.mubr.bf16.mxu0 0
        %1354 = vmatmul.mubr.bf16.gmra.mxu0 %v1297
        %v1355 = vpop.f32.mrf.mxu0
        %v1356 = vadd.f32 0.0, %v1355
        %v1357 = vpop.f32.mrf.mxu0
        %v1358 = vpop.f32.mrf.mxu0
        %v1359 = vadd.f32 0.0, %v1358
        %v1360 = vpop.f32.mrf.mxu0
        %1361 = vmatprep.mubr.bf16.mxu0 0
        %1362 = vmatmul.mubr.bf16.gmra.mxu0 %v1300
        %v1363 = vpop.f32.mrf.mxu0
        %v1364 = vadd.f32 0.0, %v1363
        %v1365 = vpop.f32.mrf.mxu0
        %v1366 = vpop.f32.mrf.mxu0
        %v1367 = vpop.f32.mrf.mxu0
        %1368 = vdwg.mxu0
        %v1369 = vadd.f32 %v1264, %v1340
        %v1370 = vadd.f32 %v1265, %v1343
        %v1371 = vadd.f32 %v1266, %v1348
        %v1372 = vadd.f32 %v1267, %v1351
        %v1373 = vadd.f32 %v1268, %v1356
        %v1374 = vadd.f32 %v1269, %v1359
        %v1375 = vadd.f32 %v1270, %v1364
        %v1376 = vmax.f32 %v1369, 0.0
        %v1377 = vmax.f32 %v1370, 0.0
        %v1378 = vmax.f32 %v1371, 0.0
        %v1379 = vmax.f32 %v1372, 0.0
        %v1380 = vmax.f32 %v1373, 0.0
        %v1381 = vmax.f32 %v1374, 0.0
        %v1382 = vmax.f32 %v1375, 0.0
        %vm1383 = vcmask 64512
        %1384 = vst.msk [vmem:[%s201] sm:$0xff] %vm1383, %v1376
        %1385 = vst.msk [vmem:[%s201 + $0x8] sm:$0xff] %vm1383, %v1377
        %1386 = vst.msk [vmem:[%s201 + $0x10] sm:$0xff] %vm1383, %v1378
        %1387 = vst.msk [vmem:[%s201 + $0x18] sm:$0xff] %vm1383, %v1379
        %1388 = vst.msk [vmem:[%s201 + $0x20] sm:$0xff] %vm1383, %v1380
        %1389 = vst.msk [vmem:[%s201 + $0x28] sm:$0xff] %vm1383, %v1381
        %1390 = vst.msk [vmem:[%s201 + $0x30] sm:$0xff] %vm1383, %v1382
        %s1391 = sand.u32 %s117, 1
        %s1392 = scalar_lea.sflag [#allocation3], %s1391
        %s1393 = sand.u32 %s117, 1
        %s1394 = smul.addr %s1393, 56
        %s1395 = scalar_lea.vmem [#allocation2], %s1394
        // Predicated region
        $region33: #{tpu_custom_call.1} parent=31 // pred_check
          %p1396 = pneg %p127
        $region34: #{tpu_custom_call.1} parent=31 // pred_check_branch
          %1398 = sbr.rel (%p1396) target = $region36
        $region35: #{tpu_custom_call.1} parent=31 // pred_region
          %s1400 = ssub.s32 896, 896
          %1401 = vsyncadd %s1392, %s1400
          %s1402 = smul.addr %s21, 7
          %s1403 = sadd.s32 %s22, %s1402
          %s1404 = smul.addr %s1403, 128
          %s1405 = scalar_lea.hbm %s3, %s1404
          %s1406 = sshll.u32 %s1395, 4
          %s1407 = int_to_ptr.vmem [resolvable:$true] %s1406
          %1412 = dma.vmem_to_hbm [thread:$0]  %s1407, 896, %s1405, %s1392, 128, 128, 8
        $region36: #{tpu_custom_call.1} parent=31 // pred_fallthru
          _
      $region32: #{tpu_custom_call.1} parent=5 // pred_fallthru
        _
      %p1413 = scmp.le.s32.totalorder 2, %s12
      // Predicated region
      $region37: #{tpu_custom_call.1} parent=5 // pred_check
        %p1414 = pneg %p1413
      $region38: #{tpu_custom_call.1} parent=5 // pred_check_branch
        %1416 = sbr.rel (%p1414) target = $region40
      $region39: #{tpu_custom_call.1} parent=5 // pred_region
        %s1417 = ssub.s32 %s12, 2
        // Predicated region
        $region41: #{tpu_custom_call.1} parent=39 // pred_check
          %p1418 = pneg %p133
        $region42: #{tpu_custom_call.1} parent=39 // pred_check_branch
          %1420 = sbr.rel (%p1418) target = $region44
        $region43: #{tpu_custom_call.1} parent=39 // pred_region
          %s1421 = sand.u32 %s118, 1
          %s1422 = scalar_lea.sflag [#allocation3], %s1421
          %s1423 = sand.u32 %s118, 1
          %s1424 = smul.addr %s1423, 56
          %s1425 = scalar_lea.vmem [#allocation2], %s1424
          %1426 = dma.done %s1422, 896
        $region44: #{tpu_custom_call.1} parent=39 // pred_fallthru
          _
      $region40: #{tpu_custom_call.1} parent=5 // pred_fallthru
        _
    $region6: #{tpu_custom_call.1} parent=1 // loop_footer
      %s16 = sadd.s32 1, %s12
    $region7: #{tpu_custom_call.1} parent=1 // loop_footer_branch
      %11 = sbr.rel target = $region3
    $region8: #{tpu_custom_call.1} parent=1 // loop_exit
      _
    %1427 = vsyncpa [#allocation3], 1
    %s1428 = scalar_lea.sflag [#allocation3], 1
    %1429 = vsyncpa %s1428, 1

</llo_original>
